<compile_context>
chip_gen: v6e
topology: v6e:2x2x1
jax: 0.10.0
libtpu: 0.0.40
codegen_flags: <defaults>
</compile_context>

<pallas_src>
import jax
import jax.numpy as jnp
from jax import lax
from jax.experimental import pallas as pl
from jax.experimental.pallas import tpu as pltpu


def _round_up(x, m):
    return (x + m - 1) // m * m


def _pick_tile(n, candidates):
    for t in candidates:
        if n % t == 0:
            return t
    return 128  # n is always a multiple of 128 after padding


def self_attn_kernel(xq_ref, kp_ref, v_ref, cj_ref, gamma_ref, out_ref,
                     qb_scr, m_scr, l_scr, acc_scr):
    """One (batch, q-tile, kv-tile) step of channel-first flash attention.

    xq_ref : (1, C, TQ)  f32   raw x for the query positions (also residual)
    kp_ref : (1, C, TK)  bf16  K' = (Wq^T Wk) @ x for this kv tile
    v_ref  : (1, C, TK)  bf16  V  =  Wv @ x + bv  for this kv tile
    cj_ref : (1, TK, 1)  f32   per-key bias (Wk^T bq)^T x_j  (-1e30 on padding)
    gamma  : (1, 1)      f32   in SMEM
    out_ref: (1, C, TQ)  f32
    scratch: qb (C,TQ) bf16, m (1,TQ), l (1,TQ), acc (C,TQ) f32
    """
    ki = pl.program_id(2)

    @pl.when(ki == 0)
    def _init():
        qb_scr[...] = xq_ref[0].astype(jnp.bfloat16)   # cast once per q-tile
        m_scr[...] = jnp.full_like(m_scr, -jnp.inf)
        l_scr[...] = jnp.zeros_like(l_scr)
        acc_scr[...] = jnp.zeros_like(acc_scr)

    kp = kp_ref[0]                                     # (C, TK) bf16
    v = v_ref[0]                                       # (C, TK) bf16
    cj = cj_ref[0]                                     # (TK, 1) f32

    # scores[j, i] = K'[:, j] . x_q[:, i] + cj[j]; softmax over j (axis 0).
    # (TK, TQ) layout keeps TQ on lanes -> lane-dense stats/acc (per review).
    s = lax.dot_general(kp, qb_scr[...], (((0,), (0,)), ((), ())),
                        preferred_element_type=jnp.float32)      # (TK, TQ)
    s = s + cj

    # Online softmax update (stats in f32).
    m_prev = m_scr[...]                                          # (1, TQ)
    m_new = jnp.maximum(m_prev, jnp.max(s, axis=0, keepdims=True))
    alpha = jnp.exp(m_prev - m_new)                              # (1, TQ)
    p = jnp.exp(s - m_new)                                       # (TK, TQ)
    l_scr[...] = alpha * l_scr[...] + jnp.sum(p, axis=0, keepdims=True)
    acc_scr[...] = alpha * acc_scr[...] + jnp.dot(
        v, p.astype(jnp.bfloat16),
        preferred_element_type=jnp.float32)                      # (C, TQ)
    m_scr[...] = m_new

    @pl.when(ki == pl.num_programs(2) - 1)
    def _finalize():
        gamma = gamma_ref[0, 0]
        inv_l = pl.reciprocal(l_scr[...], approx=True)           # (1, TQ)
        out_ref[0] = (gamma * (acc_scr[...] * inv_l)
                      + xq_ref[0]).astype(out_ref.dtype)


def self_attention_block(x_nchw, params):
    b, c, h, w = x_nchw.shape
    n = h * w

    # Channel-first; NCHW -> (B, C, N) is a free reshape (N on lanes).
    x = x_nchw.reshape(b, c, n).astype(jnp.float32)

    wq = params["wq"].astype(jnp.float32)                 # (Cq, C)
    wk = params["wk"].astype(jnp.float32)                 # (Cq, C)
    bq = params["bq"].astype(jnp.float32).reshape(-1)     # (Cq,)
    # bk cancels exactly under softmax over the key index -> unused.
    wv = params["wv"].astype(jnp.float32)                 # (C, C)
    bv = params["bv"].astype(jnp.float32).reshape(c, 1)   # (C, 1)
    gamma = params["gamma"].astype(jnp.float32).reshape(1, 1)

    # Pad N to a multiple of 128 so the flash-tiled fast path always applies.
    n_pad = _round_up(n, 128)
    pad = n_pad - n
    if pad:
        x = jnp.pad(x, ((0, 0), (0, 0), (0, pad)))

    # ---- Hoisted per-batch projections (once, via XLA) --------------------
    mm = wq.T @ wk                                                    # (C, C)
    u = wk.T @ bq                                                     # (C,)
    kp = jnp.einsum("cd,bdn->bcn", mm, x).astype(jnp.bfloat16)        # (B,C,Np)
    v = (jnp.einsum("cd,bdn->bcn", wv, x)
         + bv[None, :, :]).astype(jnp.bfloat16)                       # (B,C,Np)
    cj = jnp.einsum("c,bcn->bn", u, x)[..., None]                     # (B,Np,1)
    if pad:
        key_is_pad = (jnp.arange(n_pad) >= n)[None, :, None]
        cj = jnp.where(key_is_pad, jnp.float32(-1e30), cj)            # mask keys
    cj = cj.astype(jnp.float32)

    # ---- Tiling ------------------------------------------------------------
    tq = _pick_tile(n_pad, (512, 256, 128))
    tk = _pick_tile(n_pad, (256, 128))
    # Keep >= 2 parallel grid steps so both v7x TensorCores get work.
    while tq > 128 and b * (n_pad // tq) < 2:
        tq //= 2
    grid = (b, n_pad // tq, n_pad // tk)

    out_bcn = pl.pallas_call(
        self_attn_kernel,
        out_shape=jax.ShapeDtypeStruct((b, c, n_pad), jnp.float32),
        grid_spec=pltpu.PrefetchScalarGridSpec(
            num_scalar_prefetch=0,
            grid=grid,
            in_specs=[
                pl.BlockSpec((1, c, tq), lambda bi, qi, ki: (bi, 0, qi)),  # x (queries/residual)
                pl.BlockSpec((1, c, tk), lambda bi, qi, ki: (bi, 0, ki)),  # K'
                pl.BlockSpec((1, c, tk), lambda bi, qi, ki: (bi, 0, ki)),  # V
                pl.BlockSpec((1, tk, 1), lambda bi, qi, ki: (bi, ki, 0)),  # cj
                pl.BlockSpec(memory_space=pltpu.MemorySpace.SMEM),         # gamma
            ],
            out_specs=pl.BlockSpec((1, c, tq), lambda bi, qi, ki: (bi, 0, qi)),
            scratch_shapes=[
                pltpu.VMEM((c, tq), jnp.bfloat16),   # bf16 query tile
                pltpu.VMEM((1, tq), jnp.float32),    # running max
                pltpu.VMEM((1, tq), jnp.float32),    # running sum
                pltpu.VMEM((c, tq), jnp.float32),    # output accumulator
            ],
        ),
        compiler_params=pltpu.CompilerParams(
            dimension_semantics=("parallel", "parallel", "arbitrary"),
            vmem_limit_bytes=32 * 1024 * 1024,
        ),
    )(x, kp, v, cj, gamma)

    return out_bcn[:, :, :n].reshape(b, c, h, w)


def reference(x_nchw, params):
    """Pure-JAX f32 port of the PyTorch forward, for verification."""
    b, c, h, w = x_nchw.shape
    n = h * w
    xf = x_nchw.reshape(b, c, n)

    def conv1x1(wt, bs):
        return jnp.einsum("oc,bcn->bon", wt, xf) + bs.reshape(1, -1, 1)

    q = conv1x1(params["wq"], params["bq"])      # (B, Cq, N)
    k = conv1x1(params["wk"], params["bk"])      # (B, Cq, N)
    v = conv1x1(params["wv"], params["bv"])      # (B, C,  N)
    energy = jnp.einsum("bci,bcj->bij", q, k)    # (B, N, N)
    attn = jax.nn.softmax(energy, axis=-1)
    out = jnp.einsum("bcj,bij->bci", v, attn)    # (B, C, N)
    out = out.reshape(b, c, h, w)
    return params["gamma"].reshape(()) * out + x_nchw


if __name__ == "__main__":
    B, C, H, W = 2, 16, 16, 16        # in_channels >= 8 (C // 8 q/k channels)
    Cq = C // 8

    key = jax.random.PRNGKey(0)
    kx, kwq, kbq, kwk, kbk, kwv, kbv = jax.random.split(key, 7)

    x = jax.random.normal(kx, (B, C, H, W), jnp.float32)

    # Conv2d(k=1) weights (out, in); biases (out,).
    # NOTE: gamma is initialized to 0 in the module; use 0.5 here so the
    # attention path actually contributes in this synthetic check.
    params = {
        "wq": jax.random.normal(kwq, (Cq, C), jnp.float32) * 0.1,
        "bq": jax.random.normal(kbq, (Cq,), jnp.float32) * 0.1,
        "wk": jax.random.normal(kwk, (Cq, C), jnp.float32) * 0.1,
        "bk": jax.random.normal(kbk, (Cq,), jnp.float32) * 0.1,
        "wv": jax.random.normal(kwv, (C, C), jnp.float32) * 0.1,
        "bv": jax.random.normal(kbv, (C,), jnp.float32) * 0.1,
        "gamma": jnp.full((1,), 0.5, jnp.float32),
    }

    out = jax.block_until_ready(self_attention_block(x, params))
    ref = reference(x, params)

    assert out.shape == (B, C, H, W)
    max_err = float(jnp.max(jnp.abs(out - ref)))
    # bf16 MXU operands (f32 stats/accumulation) => relaxed tolerance.
    assert jnp.allclose(out, ref, atol=1e-2, rtol=1e-2), (
        f"mismatch vs reference, max abs err = {max_err}")

    print("KERNEL_OK")
</pallas_src>

<mosaic_0001>
module attributes {stable_mosaic.version = 11 : i64} {
  func.func @self_attn_kernel(%arg0: i32, %arg1: i32, %arg2: i32, %arg3: memref<1x16x256xf32, #tpu.memory_space<vmem>>, %arg4: memref<1x16x256xbf16, #tpu.memory_space<vmem>>, %arg5: memref<1x16x256xbf16, #tpu.memory_space<vmem>>, %arg6: memref<1x256x1xf32, #tpu.memory_space<vmem>>, %arg7: memref<1x1xf32, #tpu.memory_space<smem>>, %arg8: memref<1x16x256xf32, #tpu.memory_space<vmem>>, %arg9: memref<16x256xbf16, #tpu.memory_space<vmem>>, %arg10: memref<1x256xf32, #tpu.memory_space<vmem>>, %arg11: memref<1x256xf32, #tpu.memory_space<vmem>>, %arg12: memref<16x256xf32, #tpu.memory_space<vmem>>) attributes {dimension_semantics = [#tpu.dimension_semantics<parallel>, #tpu.dimension_semantics<parallel>, #tpu.dimension_semantics<arbitrary>], iteration_bounds = array<i64: 2, 1, 1>, scalar_prefetch = 0 : i64, scratch_operands = 4 : i64, tpu.core_type = #tpu.core_type<tc>, window_params = [{transform_indices = @transform_0, window_bounds = array<i64: 1, 16, 256>}, {transform_indices = @transform_1, window_bounds = array<i64: 1, 16, 256>}, {transform_indices = @transform_2, window_bounds = array<i64: 1, 16, 256>}, {transform_indices = @transform_3, window_bounds = array<i64: 1, 256, 1>}, {transform_indices = @transform_4, window_bounds = array<i64: 1, 1>}, {transform_indices = @transform_5, window_bounds = array<i64: 1, 16, 256>}]} {
    %c0_i32 = arith.constant 0 : i32
    %0 = arith.cmpi eq, %arg2, %c0_i32 : i32
    %1 = arith.extui %0 : i1 to i32
    %c0_i32_0 = arith.constant 0 : i32
    %2 = arith.cmpi ne, %1, %c0_i32_0 : i32
    scf.if %2 {
      %c0_28 = arith.constant 0 : index
      %c0_29 = arith.constant 0 : index
      %c0_30 = arith.constant 0 : index
      %39 = vector.load %arg3[%c0_28, %c0_29, %c0_30] : memref<1x16x256xf32, #tpu.memory_space<vmem>>, vector<1x16x256xf32>
      %40 = vector.shape_cast %39 : vector<1x16x256xf32> to vector<16x256xf32>
      %41 = arith.truncf %40 : vector<16x256xf32> to vector<16x256xbf16>
      %c0_31 = arith.constant 0 : index
      %c0_32 = arith.constant 0 : index
      %42 = vector.load %arg9[%c0_31, %c0_32] : memref<16x256xbf16, #tpu.memory_space<vmem>>, vector<16x256xbf16>
      tpu.vector_store %arg9[%c0_31, %c0_32], %41 {strides = array<i32>} : memref<16x256xbf16, #tpu.memory_space<vmem>>, vector<16x256xbf16>,
      %cst_33 = arith.constant 0xFF800000 : f32
      %43 = vector.broadcast %cst_33 : f32 to vector<1x256xf32>
      %c0_34 = arith.constant 0 : index
      %c0_35 = arith.constant 0 : index
      %44 = vector.load %arg10[%c0_34, %c0_35] : memref<1x256xf32, #tpu.memory_space<vmem>>, vector<1x256xf32>
      tpu.vector_store %arg10[%c0_34, %c0_35], %43 {strides = array<i32>} : memref<1x256xf32, #tpu.memory_space<vmem>>, vector<1x256xf32>,
      %cst_36 = arith.constant 0.000000e+00 : f32
      %45 = vector.broadcast %cst_36 : f32 to vector<1x256xf32>
      %c0_37 = arith.constant 0 : index
      %c0_38 = arith.constant 0 : index
      %46 = vector.load %arg11[%c0_37, %c0_38] : memref<1x256xf32, #tpu.memory_space<vmem>>, vector<1x256xf32>
      tpu.vector_store %arg11[%c0_37, %c0_38], %45 {strides = array<i32>} : memref<1x256xf32, #tpu.memory_space<vmem>>, vector<1x256xf32>,
      %cst_39 = arith.constant 0.000000e+00 : f32
      %47 = vector.broadcast %cst_39 : f32 to vector<16x256xf32>
      %c0_40 = arith.constant 0 : index
      %c0_41 = arith.constant 0 : index
      %48 = vector.load %arg12[%c0_40, %c0_41] : memref<16x256xf32, #tpu.memory_space<vmem>>, vector<16x256xf32>
      tpu.vector_store %arg12[%c0_40, %c0_41], %47 {strides = array<i32>} : memref<16x256xf32, #tpu.memory_space<vmem>>, vector<16x256xf32>,
    } else {
    }
    %c0 = arith.constant 0 : index
    %c0_1 = arith.constant 0 : index
    %c0_2 = arith.constant 0 : index
    %3 = vector.load %arg4[%c0, %c0_1, %c0_2] : memref<1x16x256xbf16, #tpu.memory_space<vmem>>, vector<1x16x256xbf16>
    %4 = vector.shape_cast %3 : vector<1x16x256xbf16> to vector<16x256xbf16>
    %c0_3 = arith.constant 0 : index
    %c0_4 = arith.constant 0 : index
    %c0_5 = arith.constant 0 : index
    %5 = vector.load %arg5[%c0_3, %c0_4, %c0_5] : memref<1x16x256xbf16, #tpu.memory_space<vmem>>, vector<1x16x256xbf16>
    %6 = vector.shape_cast %5 : vector<1x16x256xbf16> to vector<16x256xbf16>
    %c0_6 = arith.constant 0 : index
    %c0_7 = arith.constant 0 : index
    %c0_8 = arith.constant 0 : index
    %7 = vector.load %arg6[%c0_6, %c0_7, %c0_8] : memref<1x256x1xf32, #tpu.memory_space<vmem>>, vector<1x256x1xf32>
    %8 = vector.shape_cast %7 : vector<1x256x1xf32> to vector<256x1xf32>
    %c0_9 = arith.constant 0 : index
    %c0_10 = arith.constant 0 : index
    %9 = vector.load %arg9[%c0_9, %c0_10] : memref<16x256xbf16, #tpu.memory_space<vmem>>, vector<16x256xbf16>
    %cst = arith.constant dense<0.000000e+00> : vector<256x256xf32>
    %10 = tpu.matmul %4, %9, %cst {dimension_numbers = #tpu.dot_dimension_numbers<[0], [0], [1], [1], [0, 1, 1, 1], [], []>} : vector<16x256xbf16>, vector<16x256xbf16>, vector<256x256xf32> -> vector<256x256xf32>
    %11 = vector.broadcast %8 : vector<256x1xf32> to vector<256x256xf32>
    %12 = arith.addf %10, %11 : vector<256x256xf32>
    %c0_11 = arith.constant 0 : index
    %c0_12 = arith.constant 0 : index
    %13 = vector.load %arg10[%c0_11, %c0_12] : memref<1x256xf32, #tpu.memory_space<vmem>>, vector<1x256xf32>
    %cst_13 = arith.constant dense<0xFF800000> : vector<256xf32>
    %14 = vector.multi_reduction <maximumf>, %12, %cst_13 [0] : vector<256x256xf32> to vector<256xf32>
    %15 = vector.shape_cast %14 : vector<256xf32> to vector<1x256xf32>
    %16 = arith.maximumf %13, %15 : vector<1x256xf32>
    %17 = arith.subf %13, %16 : vector<1x256xf32>
    %18 = math.exp %17 : vector<1x256xf32>
    %19 = vector.broadcast %16 : vector<1x256xf32> to vector<256x256xf32>
    %20 = arith.subf %12, %19 : vector<256x256xf32>
    %21 = math.exp %20 : vector<256x256xf32>
    %c0_14 = arith.constant 0 : index
    %c0_15 = arith.constant 0 : index
    %22 = vector.load %arg11[%c0_14, %c0_15] : memref<1x256xf32, #tpu.memory_space<vmem>>, vector<1x256xf32>
    %23 = arith.mulf %18, %22 : vector<1x256xf32>
    %cst_16 = arith.constant dense<0.000000e+00> : vector<256xf32>
    %24 = vector.multi_reduction <add>, %21, %cst_16 [0] : vector<256x256xf32> to vector<256xf32>
    %25 = vector.shape_cast %24 : vector<256xf32> to vector<1x256xf32>
    %26 = arith.addf %23, %25 : vector<1x256xf32>
    %c0_17 = arith.constant 0 : index
    %c0_18 = arith.constant 0 : index
    %27 = vector.load %arg11[%c0_17, %c0_18] : memref<1x256xf32, #tpu.memory_space<vmem>>, vector<1x256xf32>
    tpu.vector_store %arg11[%c0_17, %c0_18], %26 {strides = array<i32>} : memref<1x256xf32, #tpu.memory_space<vmem>>, vector<1x256xf32>,
    %c0_19 = arith.constant 0 : index
    %c0_20 = arith.constant 0 : index
    %28 = vector.load %arg12[%c0_19, %c0_20] : memref<16x256xf32, #tpu.memory_space<vmem>>, vector<16x256xf32>
    %29 = vector.broadcast %18 : vector<1x256xf32> to vector<16x256xf32>
    %30 = arith.mulf %29, %28 : vector<16x256xf32>
    %31 = arith.truncf %21 : vector<256x256xf32> to vector<256x256xbf16>
    %cst_21 = arith.constant dense<0.000000e+00> : vector<16x256xf32>
    %32 = tpu.matmul %6, %31, %cst_21 {dimension_numbers = #tpu.dot_dimension_numbers<[1], [0], [0], [1], [0, 0, 1, 1], [], []>} : vector<16x256xbf16>, vector<256x256xbf16>, vector<16x256xf32> -> vector<16x256xf32>
    %33 = arith.addf %30, %32 : vector<16x256xf32>
    %c0_22 = arith.constant 0 : index
    %c0_23 = arith.constant 0 : index
    %34 = vector.load %arg12[%c0_22, %c0_23] : memref<16x256xf32, #tpu.memory_space<vmem>>, vector<16x256xf32>
    tpu.vector_store %arg12[%c0_22, %c0_23], %33 {strides = array<i32>} : memref<16x256xf32, #tpu.memory_space<vmem>>, vector<16x256xf32>,
    %c0_24 = arith.constant 0 : index
    %c0_25 = arith.constant 0 : index
    %35 = vector.load %arg10[%c0_24, %c0_25] : memref<1x256xf32, #tpu.memory_space<vmem>>, vector<1x256xf32>
    tpu.vector_store %arg10[%c0_24, %c0_25], %16 {strides = array<i32>} : memref<1x256xf32, #tpu.memory_space<vmem>>, vector<1x256xf32>,
    %c0_i32_26 = arith.constant 0 : i32
    %36 = arith.cmpi eq, %arg2, %c0_i32_26 : i32
    %37 = arith.extui %36 : i1 to i32
    %c0_i32_27 = arith.constant 0 : i32
    %38 = arith.cmpi ne, %37, %c0_i32_27 : i32
    scf.if %38 {
      %c0_28 = arith.constant 0 : index
      %c0_29 = arith.constant 0 : index
      %39 = memref.load %arg7[%c0_28, %c0_29] : memref<1x1xf32, #tpu.memory_space<smem>>
      %c0_30 = arith.constant 0 : index
      %c0_31 = arith.constant 0 : index
      %40 = vector.load %arg11[%c0_30, %c0_31] : memref<1x256xf32, #tpu.memory_space<vmem>>, vector<1x256xf32>
      %41 = tpu.reciprocal %40 {approx = true} : vector<1x256xf32> -> vector<1x256xf32>
      %c0_32 = arith.constant 0 : index
      %c0_33 = arith.constant 0 : index
      %42 = vector.load %arg12[%c0_32, %c0_33] : memref<16x256xf32, #tpu.memory_space<vmem>>, vector<16x256xf32>
      %43 = vector.broadcast %41 : vector<1x256xf32> to vector<16x256xf32>
      %44 = arith.mulf %42, %43 : vector<16x256xf32>
      %45 = vector.broadcast %39 : f32 to vector<16x256xf32>
      %46 = arith.mulf %45, %44 : vector<16x256xf32>
      %c0_34 = arith.constant 0 : index
      %c0_35 = arith.constant 0 : index
      %c0_36 = arith.constant 0 : index
      %47 = vector.load %arg3[%c0_34, %c0_35, %c0_36] : memref<1x16x256xf32, #tpu.memory_space<vmem>>, vector<1x16x256xf32>
      %48 = vector.shape_cast %47 : vector<1x16x256xf32> to vector<16x256xf32>
      %49 = arith.addf %46, %48 : vector<16x256xf32>
      %c0_37 = arith.constant 0 : index
      %c0_38 = arith.constant 0 : index
      %c0_39 = arith.constant 0 : index
      %50 = vector.load %arg8[%c0_37, %c0_38, %c0_39] : memref<1x16x256xf32, #tpu.memory_space<vmem>>, vector<1x16x256xf32>
      %51 = vector.shape_cast %50 : vector<1x16x256xf32> to vector<16x256xf32>
      %52 = vector.shape_cast %49 : vector<16x256xf32> to vector<1x16x256xf32>
      tpu.vector_store %arg8[%c0_37, %c0_38, %c0_39], %52 {strides = array<i32>} : memref<1x16x256xf32, #tpu.memory_space<vmem>>, vector<1x16x256xf32>,
    } else {
    }
    return
  }
  func.func @transform_0(%arg0: i32, %arg1: i32, %arg2: i32) -> (i32, i32, i32) {
    %c0_i32 = arith.constant 0 : i32
    %c0_i32_0 = arith.constant 0 : i32
    return %arg0, %c0_i32, %arg1 : i32, i32, i32
  }
  func.func @transform_1(%arg0: i32, %arg1: i32, %arg2: i32) -> (i32, i32, i32) {
    %c0_i32 = arith.constant 0 : i32
    %c0_i32_0 = arith.constant 0 : i32
    return %arg0, %c0_i32, %arg2 : i32, i32, i32
  }
  func.func @transform_2(%arg0: i32, %arg1: i32, %arg2: i32) -> (i32, i32, i32) {
    %c0_i32 = arith.constant 0 : i32
    %c0_i32_0 = arith.constant 0 : i32
    return %arg0, %c0_i32, %arg2 : i32, i32, i32
  }
  func.func @transform_3(%arg0: i32, %arg1: i32, %arg2: i32) -> (i32, i32, i32) {
    %c0_i32 = arith.constant 0 : i32
    %c0_i32_0 = arith.constant 0 : i32
    return %arg0, %arg2, %c0_i32 : i32, i32, i32
  }
  func.func @transform_4(%arg0: i32, %arg1: i32, %arg2: i32) -> (i32, i32) {
    %c0_i32 = arith.constant 0 : i32
    %c0_i32_0 = arith.constant 0 : i32
    %c0_i32_1 = arith.constant 0 : i32
    return %c0_i32, %c0_i32_0 : i32, i32
  }
  func.func @transform_5(%arg0: i32, %arg1: i32, %arg2: i32) -> (i32, i32, i32) {
    %c0_i32 = arith.constant 0 : i32
    %c0_i32_0 = arith.constant 0 : i32
    return %arg0, %c0_i32, %arg1 : i32, i32, i32
  }
}

</mosaic_0001>

<llo_original>
// kernel: tpu_custom_call.1
$region0: #{tpu_custom_call.1}
  #allocation0 [shape = 'u32[]', space=smem, size = 0x4, offset = 0x4, fixed_abs, tag = 'smem constant byte address 0x4 - core index']
  #allocation1 [shape = 'u32[144,128]{1,0:T(1,128)}', space=vmem, size = 0x12000, scoped, tag = 'internal scratch']
  #allocation2 [shape = 'bf16[16,256]{1,0:T(8,128)(2,1)}', space=vmem, size = 0x2000, scoped, tag = 'scratch operand']
  #allocation3 [shape = 'f32[1,256]{1,0:T(1,128)}', space=vmem, size = 0x400, scoped, tag = 'scratch operand']
  #allocation4 [shape = 'f32[1,256]{1,0:T(1,128)}', space=vmem, size = 0x400, scoped, tag = 'scratch operand']
  #allocation5 [shape = 'f32[16,256]{1,0:T(8,128)}', space=vmem, size = 0x4000, scoped, tag = 'scratch operand']
  #allocation6 [shape = 'f32[1,1]{1,0:T(1,128)S(6)}', space=smem, size = 0x200, scoped, tag = 'scoped memory for tpu_custom_call.1']
  %s0 = inlined_call_operand.vmem [shape: f32[2,16,256], index: 0, kind: input, shape index: {}]
  %s1 = inlined_call_operand.vmem [shape: bf16[2,16,256], index: 1, kind: input, shape index: {}]
  %s2 = inlined_call_operand.vmem [shape: bf16[2,16,256], index: 2, kind: input, shape index: {}]
  %s3 = inlined_call_operand.vmem [shape: f32[2,256,1], index: 3, kind: input, shape index: {}]
  %s4 = inlined_call_operand.<no memory space> [shape: f32[1,1], index: 4, kind: input, shape index: {}]
  %s5 = inlined_call_operand.hbm [shape: f32[2,16,256], index: 5, kind: output, shape index: {}]
  %s6 = sld [smem:[#allocation0]]
  $region61: #{tpu_custom_call.1} parent=0
    _
  %s8 = ssub.s32 1, %s6
  %s9 = scalar_select 0, %s8, %s6
  %10 = sst [smem:[#allocation6]] %s4
  $region1: #{tpu_custom_call.1} parent=0
    #allocation7 [shape = 'u8[32768]{0}', space=vmem, size = 0x8000, scoped, tag = 'output window, operand 0']
    #allocation8 [shape = 's32[2]{0}', space=sflag, size = 0x8, scoped, tag = 'scoped memory for tpu_custom_call.1']
    %11 = vsyncpa [#allocation8], 0
    %s12 = scalar_lea.sflag [#allocation8], 1
    %13 = vsyncpa %s12, 0
    loop: start=0, step=1, limit=4
    $region2: #{tpu_custom_call.1} parent=1 // loop_pre_header
      _
    $region3: #{tpu_custom_call.1} parent=1 // loop_header
      %s15 = sphi 0, %s19
      %p16 = scmp.ge.s32.totalorder %s15, 4
      %s22 = sphi 0, %s41
      %s23 = sphi 0, %s37
      %s24 = sphi 0, %s33
      %s25 = sphi 0, %s22
      %s26 = sphi 0, %s23
      %s27 = sphi 0, %s24
      %s28 = sphi 0, %s25
      %s29 = sphi 0, %s26
      %s30 = sphi 0, %s27
      %s46 = sphi 0, %s48
      %s49 = sphi 0, %s46
      %s50 = sphi 0, %s49
      %s66 = sphi 0, %s50
      %s74 = sphi 0, %s76
      %s77 = sphi 0, %s74
      %s78 = sphi 0, %s77
      %s94 = sphi 0, %s78
      %s102 = sphi 0, %s104
      %s105 = sphi 0, %s102
      %s106 = sphi 0, %s105
      %s122 = sphi 0, %s106
      %s130 = sphi 0, %s132
      %s133 = sphi 0, %s130
      %s134 = sphi 0, %s133
      %s150 = sphi 0, %s134
      %s154 = sphi 0, %s154
      %s156 = sphi 0, %s154
      %s157 = sphi 0, %s156
      %s171 = sphi 0, %s157
      %s179 = sphi 0, %s181
      %s182 = sphi 0, %s179
      %s183 = sphi 0, %s182
      %s199 = sphi 0, %s183
    $region4: #{tpu_custom_call.1} parent=1 // loop_header_branch
      %18 = sbr.rel (%p16) target = $region8
    $region5: #{tpu_custom_call.1} parent=1 // loop_body
      %s20 = ssub.s32 %s15, 1
      %s21 = ssub.s32 %s15, 2
      %s31 = sadd.s32 1, %s24
      %p32 = scmp.ge.s32.totalorder %s31, 1
      %s33 = scalar_select %p32, 0, %s31
      %s34 = sadd.s32 1, %s23
      %s35 = scalar_select %p32, %s34, %s23
      %p36 = scmp.ge.s32.totalorder %s35, 1
      %s37 = scalar_select %p36, 0, %s35
      %s38 = sadd.s32 1, %s22
      %s39 = scalar_select %p36, %s38, %s22
      %p40 = scmp.ge.s32.totalorder %s39, 2
      %s41 = scalar_select %p40, 0, %s39
      %s42 = ssub.s32 %s22, %s41
      %s43 = ssub.s32 %s23, %s37
      %s44 = sor.u32 %s42, %s43
      %p45 = scmp.eq.s32.totalorder %s44, 0
      %s47 = sadd.s32 %s46, 1
      %s48 = scalar_select %p45, %s46, %s47
      %p51 = pneg %p45
      %p52 = scmp.eq.s32.totalorder %s15, 1
      %p53 = por %p51, %p52
      %p54 = scmp.ne.s32.totalorder %s46, %s49
      %p55 = scmp.eq.s32.totalorder %s15, 0
      %p56 = por %p54, %p55
      %p57 = scmp.ne.s32.totalorder %s46, %s49
      %p58 = scmp.eq.s32.totalorder %s20, 1
      %p59 = por %p57, %p58
      %p60 = scmp.ne.s32.totalorder %s49, %s50
      %p61 = scmp.eq.s32.totalorder %s20, 0
      %p62 = por %p60, %p61
      %p63 = scmp.ne.s32.totalorder %s49, %s50
      %p64 = scmp.eq.s32.totalorder %s21, 1
      %p65 = por %p63, %p64
      %p67 = scmp.ne.s32.totalorder %s50, %s66
      %p68 = scmp.eq.s32.totalorder %s21, 0
      %p69 = por %p67, %p68
      %s70 = ssub.s32 %s22, %s41
      %s71 = ssub.s32 %s24, %s33
      %s72 = sor.u32 %s70, %s71
      %p73 = scmp.eq.s32.totalorder %s72, 0
      %s75 = sadd.s32 %s74, 1
      %s76 = scalar_select %p73, %s74, %s75
      %p79 = pneg %p73
      %p80 = scmp.eq.s32.totalorder %s15, 1
      %p81 = por %p79, %p80
      %p82 = scmp.ne.s32.totalorder %s74, %s77
      %p83 = scmp.eq.s32.totalorder %s15, 0
      %p84 = por %p82, %p83
      %p85 = scmp.ne.s32.totalorder %s74, %s77
      %p86 = scmp.eq.s32.totalorder %s20, 1
      %p87 = por %p85, %p86
      %p88 = scmp.ne.s32.totalorder %s77, %s78
      %p89 = scmp.eq.s32.totalorder %s20, 0
      %p90 = por %p88, %p89
      %p91 = scmp.ne.s32.totalorder %s77, %s78
      %p92 = scmp.eq.s32.totalorder %s21, 1
      %p93 = por %p91, %p92
      %p95 = scmp.ne.s32.totalorder %s78, %s94
      %p96 = scmp.eq.s32.totalorder %s21, 0
      %p97 = por %p95, %p96
      %s98 = ssub.s32 %s22, %s41
      %s99 = ssub.s32 %s24, %s33
      %s100 = sor.u32 %s98, %s99
      %p101 = scmp.eq.s32.totalorder %s100, 0
      %s103 = sadd.s32 %s102, 1
      %s104 = scalar_select %p101, %s102, %s103
      %p107 = pneg %p101
      %p108 = scmp.eq.s32.totalorder %s15, 1
      %p109 = por %p107, %p108
      %p110 = scmp.ne.s32.totalorder %s102, %s105
      %p111 = scmp.eq.s32.totalorder %s15, 0
      %p112 = por %p110, %p111
      %p113 = scmp.ne.s32.totalorder %s102, %s105
      %p114 = scmp.eq.s32.totalorder %s20, 1
      %p115 = por %p113, %p114
      %p116 = scmp.ne.s32.totalorder %s105, %s106
      %p117 = scmp.eq.s32.totalorder %s20, 0
      %p118 = por %p116, %p117
      %p119 = scmp.ne.s32.totalorder %s105, %s106
      %p120 = scmp.eq.s32.totalorder %s21, 1
      %p121 = por %p119, %p120
      %p123 = scmp.ne.s32.totalorder %s106, %s122
      %p124 = scmp.eq.s32.totalorder %s21, 0
      %p125 = por %p123, %p124
      %s126 = ssub.s32 %s22, %s41
      %s127 = ssub.s32 %s24, %s33
      %s128 = sor.u32 %s126, %s127
      %p129 = scmp.eq.s32.totalorder %s128, 0
      %s131 = sadd.s32 %s130, 1
      %s132 = scalar_select %p129, %s130, %s131
      %p135 = pneg %p129
      %p136 = scmp.eq.s32.totalorder %s15, 1
      %p137 = por %p135, %p136
      %p138 = scmp.ne.s32.totalorder %s130, %s133
      %p139 = scmp.eq.s32.totalorder %s15, 0
      %p140 = por %p138, %p139
      %p141 = scmp.ne.s32.totalorder %s130, %s133
      %p142 = scmp.eq.s32.totalorder %s20, 1
      %p143 = por %p141, %p142
      %p144 = scmp.ne.s32.totalorder %s133, %s134
      %p145 = scmp.eq.s32.totalorder %s20, 0
      %p146 = por %p144, %p145
      %p147 = scmp.ne.s32.totalorder %s133, %s134
      %p148 = scmp.eq.s32.totalorder %s21, 1
      %p149 = por %p147, %p148
      %p151 = scmp.ne.s32.totalorder %s134, %s150
      %p152 = scmp.eq.s32.totalorder %s21, 0
      %p153 = por %p151, %p152
      %s155 = sadd.s32 %s154, 1
      %p158 = scmp.eq.s32.totalorder %s15, 1
      %p159 = scmp.ne.s32.totalorder %s154, %s156
      %p160 = scmp.eq.s32.totalorder %s15, 0
      %p161 = por %p159, %p160
      %p162 = scmp.ne.s32.totalorder %s154, %s156
      %p163 = scmp.eq.s32.totalorder %s20, 1
      %p164 = por %p162, %p163
      %p165 = scmp.ne.s32.totalorder %s156, %s157
      %p166 = scmp.eq.s32.totalorder %s20, 0
      %p167 = por %p165, %p166
      %p168 = scmp.ne.s32.totalorder %s156, %s157
      %p169 = scmp.eq.s32.totalorder %s21, 1
      %p170 = por %p168, %p169
      %p172 = scmp.ne.s32.totalorder %s157, %s171
      %p173 = scmp.eq.s32.totalorder %s21, 0
      %p174 = por %p172, %p173
      %s175 = ssub.s32 %s22, %s41
      %s176 = ssub.s32 %s23, %s37
      %s177 = sor.u32 %s175, %s176
      %p178 = scmp.eq.s32.totalorder %s177, 0
      %s180 = sadd.s32 %s179, 1
      %s181 = scalar_select %p178, %s179, %s180
      %p184 = pneg %p178
      %p185 = scmp.eq.s32.totalorder %s15, 1
      %p186 = por %p184, %p185
      %p187 = scmp.ne.s32.totalorder %s179, %s182
      %p188 = scmp.eq.s32.totalorder %s15, 0
      %p189 = por %p187, %p188
      %p190 = scmp.ne.s32.totalorder %s179, %s182
      %p191 = scmp.eq.s32.totalorder %s20, 1
      %p192 = por %p190, %p191
      %p193 = scmp.ne.s32.totalorder %s182, %s183
      %p194 = scmp.eq.s32.totalorder %s20, 0
      %p195 = por %p193, %p194
      %p196 = scmp.ne.s32.totalorder %s182, %s183
      %p197 = scmp.eq.s32.totalorder %s21, 1
      %p198 = por %p196, %p197
      %p200 = scmp.ne.s32.totalorder %s183, %s199
      %p201 = scmp.eq.s32.totalorder %s21, 0
      %p202 = por %p200, %p201
      %p203 = scmp.le.s32.totalorder 1, %s15
      %p204 = scmp.lt.s32.totalorder %s15, 3
      %p205 = pnand %p203, %p204
      %p206 = pneg %p205
      // Predicated region
      $region9: #{tpu_custom_call.1} parent=5 // pred_check
        _
      $region10: #{tpu_custom_call.1} parent=5 // pred_check_branch
        %208 = sbr.rel (%p205) target = $region12
      $region11: #{tpu_custom_call.1} parent=5 // pred_region
        %s209 = ssub.s32 %s15, 1
        // Predicated region
        $region13: #{tpu_custom_call.1} parent=11 // pred_check
          %p210 = pneg %p167
        $region14: #{tpu_custom_call.1} parent=11 // pred_check_branch
          %212 = sbr.rel (%p210) target = $region16
        $region15: #{tpu_custom_call.1} parent=11 // pred_region
          _
        $region16: #{tpu_custom_call.1} parent=11 // pred_fallthru
          _
      $region12: #{tpu_custom_call.1} parent=5 // pred_fallthru
        _
      %p213 = scmp.lt.s32.totalorder %s15, 2
      // Predicated region
      $region17: #{tpu_custom_call.1} parent=5 // pred_check
        %p214 = pneg %p213
      $region18: #{tpu_custom_call.1} parent=5 // pred_check_branch
        %216 = sbr.rel (%p214) target = $region20
      $region19: #{tpu_custom_call.1} parent=5 // pred_region
        // Predicated region
        $region21: #{tpu_custom_call.1} parent=19 // pred_check
          %p217 = pneg %p56
        $region22: #{tpu_custom_call.1} parent=19 // pred_check_branch
          %219 = sbr.rel (%p217) target = $region24
        $region23: #{tpu_custom_call.1} parent=19 // pred_region
          %s220 = smul.u32 2, %s23
          %p221 = scmp.lt.s32.totalorder %s22, 1
          %s222 = scalar_select %p221, %s22, 1
          %p223 = scmp.lt.s32.totalorder %s220, 1
          %s224 = scalar_select %p223, %s220, 1
          %s225 = smul.addr %s222, 4
          %s226 = sadd.s32 %s224, %s225
          %s227 = smul.addr %s226, 8
          %s228 = scalar_lea.vmem %s0, %s227
          %s229 = smul.u32 2, %s23
        $region24: #{tpu_custom_call.1} parent=19 // pred_fallthru
          _
        // Predicated region
        $region25: #{tpu_custom_call.1} parent=19 // pred_check
          %p230 = pneg %p84
        $region26: #{tpu_custom_call.1} parent=19 // pred_check_branch
          %232 = sbr.rel (%p230) target = $region28
        $region27: #{tpu_custom_call.1} parent=19 // pred_region
          %s233 = smul.u32 2, %s24
          %p234 = scmp.lt.s32.totalorder %s22, 1
          %s235 = scalar_select %p234, %s22, 1
          %p236 = scmp.lt.s32.totalorder %s233, 1
          %s237 = scalar_select %p236, %s233, 1
          %s238 = smul.addr %s235, 4
          %s239 = sadd.s32 %s237, %s238
          %s240 = smul.addr %s239, 4
          %s241 = scalar_lea.vmem %s1, %s240
          %s242 = smul.u32 2, %s24
        $region28: #{tpu_custom_call.1} parent=19 // pred_fallthru
          _
        // Predicated region
        $region29: #{tpu_custom_call.1} parent=19 // pred_check
          %p243 = pneg %p112
        $region30: #{tpu_custom_call.1} parent=19 // pred_check_branch
          %245 = sbr.rel (%p243) target = $region32
        $region31: #{tpu_custom_call.1} parent=19 // pred_region
          %s246 = smul.u32 2, %s24
          %p247 = scmp.lt.s32.totalorder %s22, 1
          %s248 = scalar_select %p247, %s22, 1
          %p249 = scmp.lt.s32.totalorder %s246, 1
          %s250 = scalar_select %p249, %s246, 1
          %s251 = smul.addr %s248, 4
          %s252 = sadd.s32 %s250, %s251
          %s253 = smul.addr %s252, 4
          %s254 = scalar_lea.vmem %s2, %s253
          %s255 = smul.u32 2, %s24
        $region32: #{tpu_custom_call.1} parent=19 // pred_fallthru
          _
        // Predicated region
        $region33: #{tpu_custom_call.1} parent=19 // pred_check
          %p256 = pneg %p140
        $region34: #{tpu_custom_call.1} parent=19 // pred_check_branch
          %258 = sbr.rel (%p256) target = $region36
        $region35: #{tpu_custom_call.1} parent=19 // pred_region
          %s259 = smul.u32 32, %s24
          %p260 = scmp.lt.s32.totalorder %s22, 1
          %s261 = scalar_select %p260, %s22, 1
          %p262 = scmp.lt.s32.totalorder %s259, 31
          %s263 = scalar_select %p262, %s259, 31
          %s264 = smul.addr %s261, 32
          %s265 = sadd.s32 %s263, %s264
          %s266 = smul.addr %s265, 8
          %s267 = scalar_lea.vmem %s3, %s266
          %s268 = smul.u32 32, %s24
        $region36: #{tpu_custom_call.1} parent=19 // pred_fallthru
          _
      $region20: #{tpu_custom_call.1} parent=5 // pred_fallthru
        _
      %p269 = scmp.le.s32.totalorder 1, %s15
      %p270 = scmp.lt.s32.totalorder %s15, 3
      %p271 = pnand %p269, %p270
      %p272 = pneg %p271
      // Predicated region
      $region37: #{tpu_custom_call.1} parent=5 // pred_check
        _
      $region38: #{tpu_custom_call.1} parent=5 // pred_check_branch
        %274 = sbr.rel (%p271) target = $region40
      $region39: #{tpu_custom_call.1} parent=5 // pred_region
        %s275 = ssub.s32 %s15, 1
        %s276 = smul.u32 2, %s26
        %p277 = scmp.lt.s32.totalorder %s25, 1
        %s278 = scalar_select %p277, %s25, 1
        %p279 = scmp.lt.s32.totalorder %s276, 1
        %s280 = scalar_select %p279, %s276, 1
        %s281 = smul.addr %s278, 4
        %s282 = sadd.s32 %s280, %s281
        %s283 = smul.addr %s282, 8
        %s284 = scalar_lea.vmem %s0, %s283
        %p285 = pneg %p62
        %p286 = pneg %p59
        %s287 = smul.u32 2, %s27
        %p288 = scmp.lt.s32.totalorder %s25, 1
        %s289 = scalar_select %p288, %s25, 1
        %p290 = scmp.lt.s32.totalorder %s287, 1
        %s291 = scalar_select %p290, %s287, 1
        %s292 = smul.addr %s289, 4
        %s293 = sadd.s32 %s291, %s292
        %s294 = smul.addr %s293, 4
        %s295 = scalar_lea.vmem %s1, %s294
        %p296 = pneg %p90
        %p297 = pneg %p87
        %s298 = smul.u32 2, %s27
        %p299 = scmp.lt.s32.totalorder %s25, 1
        %s300 = scalar_select %p299, %s25, 1
        %p301 = scmp.lt.s32.totalorder %s298, 1
        %s302 = scalar_select %p301, %s298, 1
        %s303 = smul.addr %s300, 4
        %s304 = sadd.s32 %s302, %s303
        %s305 = smul.addr %s304, 4
        %s306 = scalar_lea.vmem %s2, %s305
        %p307 = pneg %p118
        %p308 = pneg %p115
        %s309 = smul.u32 32, %s27
        %p310 = scmp.lt.s32.totalorder %s25, 1
        %s311 = scalar_select %p310, %s25, 1
        %p312 = scmp.lt.s32.totalorder %s309, 31
        %s313 = scalar_select %p312, %s309, 31
        %s314 = smul.addr %s311, 32
        %s315 = sadd.s32 %s313, %s314
        %s316 = smul.addr %s315, 8
        %s317 = scalar_lea.vmem %s3, %s316
        %p318 = pneg %p146
        %p319 = pneg %p143
        %p320 = pneg %p167
        %p321 = pneg %p164
        %p322 = pneg %p195
        %p323 = pneg %p192
        %s324 = sand.u32 %s182, 1
        %s325 = scalar_lea.sflag [#allocation8], %s324
        %s326 = sand.u32 %s182, 1
        %s327 = smul.addr %s326, 32
        %s328 = scalar_lea.vmem [#allocation7], %s327
        %s329 = smul.u32 2, %s26
        %p330 = scmp.lt.s32.totalorder %s25, 1
        %s331 = scalar_select %p330, %s25, 1
        %p332 = scmp.lt.s32.totalorder %s329, 1
        %s333 = scalar_select %p332, %s329, 1
        %s334 = smul.addr %s331, 4
        %s335 = sadd.s32 %s333, %s334
        %s336 = smul.addr %s335, 8
        %s337 = scalar_lea.vmem %s0, %s336
        %s338 = smul.u32 2, %s26
        %s339 = smul.u32 2, %s27
        %p340 = scmp.lt.s32.totalorder %s25, 1
        %s341 = scalar_select %p340, %s25, 1
        %p342 = scmp.lt.s32.totalorder %s339, 1
        %s343 = scalar_select %p342, %s339, 1
        %s344 = smul.addr %s341, 4
        %s345 = sadd.s32 %s343, %s344
        %s346 = smul.addr %s345, 4
        %s347 = scalar_lea.vmem %s1, %s346
        %s348 = smul.u32 2, %s27
        %s349 = smul.u32 2, %s27
        %p350 = scmp.lt.s32.totalorder %s25, 1
        %s351 = scalar_select %p350, %s25, 1
        %p352 = scmp.lt.s32.totalorder %s349, 1
        %s353 = scalar_select %p352, %s349, 1
        %s354 = smul.addr %s351, 4
        %s355 = sadd.s32 %s353, %s354
        %s356 = smul.addr %s355, 4
        %s357 = scalar_lea.vmem %s2, %s356
        %s358 = smul.u32 2, %s27
        %s359 = smul.u32 32, %s27
        %p360 = scmp.lt.s32.totalorder %s25, 1
        %s361 = scalar_select %p360, %s25, 1
        %p362 = scmp.lt.s32.totalorder %s359, 31
        %s363 = scalar_select %p362, %s359, 31
        %s364 = smul.addr %s361, 32
        %s365 = sadd.s32 %s363, %s364
        %s366 = smul.addr %s365, 8
        %s367 = scalar_lea.vmem %s3, %s366
        %s368 = smul.u32 32, %s27
        %s369 = smul.u32 2, %s26
        %p371 = scmp.eq.s32.totalorder %s27, 0
        // Predicated region
        $region41: #{tpu_custom_call.1} parent=39 // pred_check
          %p372 = pneg %p371
        $region42: #{tpu_custom_call.1} parent=39 // pred_check_branch
          %374 = sbr.rel (%p372) target = $region44
        $region43: #{tpu_custom_call.1} parent=39 // pred_region
          %v375 = vld [vmem:[%s337] sm:$0xff]
          %v376 = vld [vmem:[%s337 + $0x8] sm:$0xff]
          %v377 = vld [vmem:[%s337 + $0x10] sm:$0xff]
          %v378 = vld [vmem:[%s337 + $0x18] sm:$0xff]
          %v379 = vpack.c.bf16 %v377, %v375
          %v380 = vpack.c.bf16 %v378, %v376
          %v383 = vunpack.c.l.b16 %v379
          %v384 = vunpack.c.l.b16 %v380
          %v385 = vunpack.c.h.b16 %v379
          %v386 = vunpack.c.h.b16 %v380
          %v387 = vpack.c.b16 %v384, %v383
          %v388 = vpack.c.b16 %v386, %v385
          %391 = vst [vmem:[#allocation2] sm:$0xff] %v387
          %392 = vst [vmem:[#allocation2 + $0x8] sm:$0xff] %v388
          %v393 = vlaneseq
          %vm394 = vcmp.ge.s32.totalorder %v393, 0
          %vm395 = vcmp.lt.s32.totalorder %v393, 256
          %vm396 = vmand %vm394, %vm395
          %397 = vst.msk [vmem:[#allocation3] sm:$0x3] %vm396, -inf
          %398 = vst.msk [vmem:[#allocation4] sm:$0x3] %vm396, 0.0
          %399 = vst [vmem:[#allocation5] sm:$0xff] 0.0
          %400 = vst [vmem:[#allocation5 + $0x8] sm:$0xff] 0.0
          %401 = vst [vmem:[#allocation5 + $0x10] sm:$0xff] 0.0
          %402 = vst [vmem:[#allocation5 + $0x18] sm:$0xff] 0.0
        $region44: #{tpu_custom_call.1} parent=39 // pred_fallthru
          _
        %v403 = vld [vmem:[%s347] sm:$0xff]
        %v404 = vld [vmem:[%s347 + $0x8] sm:$0xff]
        %v405 = vld [vmem:[%s357] sm:$0xff]
        %v406 = vld [vmem:[%s357 + $0x8] sm:$0xff]
        %v407 = vld [vmem:[%s367] sm:$0xff]
        %v408 = vld [vmem:[%s367 + $0x8] sm:$0xff]
        %v409 = vld [vmem:[%s367 + $0x10] sm:$0xff]
        %v410 = vld [vmem:[%s367 + $0x18] sm:$0xff]
        %v411 = vld [vmem:[%s367 + $0x20] sm:$0xff]
        %v412 = vld [vmem:[%s367 + $0x28] sm:$0xff]
        %v413 = vld [vmem:[%s367 + $0x30] sm:$0xff]
        %v414 = vld [vmem:[%s367 + $0x38] sm:$0xff]
        %v415 = vld [vmem:[%s367 + $0x40] sm:$0xff]
        %v416 = vld [vmem:[%s367 + $0x48] sm:$0xff]
        %v417 = vld [vmem:[%s367 + $0x50] sm:$0xff]
        %v418 = vld [vmem:[%s367 + $0x58] sm:$0xff]
        %v419 = vld [vmem:[%s367 + $0x60] sm:$0xff]
        %v420 = vld [vmem:[%s367 + $0x68] sm:$0xff]
        %v421 = vld [vmem:[%s367 + $0x70] sm:$0xff]
        %v422 = vld [vmem:[%s367 + $0x78] sm:$0xff]
        %v423 = vld [vmem:[%s367 + $0x80] sm:$0xff]
        %v424 = vld [vmem:[%s367 + $0x88] sm:$0xff]
        %v425 = vld [vmem:[%s367 + $0x90] sm:$0xff]
        %v426 = vld [vmem:[%s367 + $0x98] sm:$0xff]
        %v427 = vld [vmem:[%s367 + $0xa0] sm:$0xff]
        %v428 = vld [vmem:[%s367 + $0xa8] sm:$0xff]
        %v429 = vld [vmem:[%s367 + $0xb0] sm:$0xff]
        %v430 = vld [vmem:[%s367 + $0xb8] sm:$0xff]
        %v431 = vld [vmem:[%s367 + $0xc0] sm:$0xff]
        %v432 = vld [vmem:[%s367 + $0xc8] sm:$0xff]
        %v433 = vld [vmem:[%s367 + $0xd0] sm:$0xff]
        %v434 = vld [vmem:[%s367 + $0xd8] sm:$0xff]
        %v435 = vld [vmem:[%s367 + $0xe0] sm:$0xff]
        %v436 = vld [vmem:[%s367 + $0xe8] sm:$0xff]
        %v437 = vld [vmem:[%s367 + $0xf0] sm:$0xff]
        %v438 = vld [vmem:[%s367 + $0xf8] sm:$0xff]
        %v439 = vld [vmem:[#allocation2] sm:$0xff]
        %v440 = vld [vmem:[#allocation2 + $0x8] sm:$0xff]
        %442 = vset.pattern.permute.xlu0 0
        %443 = vperm.xlu0 %442, %v407
        %v444 = vpop.permute.xlu0 %443
        %447 = vset.pattern.permute.xlu0 0
        %448 = vperm.xlu0 %447, %v408
        %v449 = vpop.permute.xlu0 %448
        %452 = vset.pattern.permute.xlu0 0
        %453 = vperm.xlu0 %452, %v409
        %v454 = vpop.permute.xlu0 %453
        %457 = vset.pattern.permute.xlu0 0
        %458 = vperm.xlu0 %457, %v410
        %v459 = vpop.permute.xlu0 %458
        %462 = vset.pattern.permute.xlu0 0
        %463 = vperm.xlu0 %462, %v411
        %v464 = vpop.permute.xlu0 %463
        %467 = vset.pattern.permute.xlu0 0
        %468 = vperm.xlu0 %467, %v412
        %v469 = vpop.permute.xlu0 %468
        %472 = vset.pattern.permute.xlu0 0
        %473 = vperm.xlu0 %472, %v413
        %v474 = vpop.permute.xlu0 %473
        %477 = vset.pattern.permute.xlu0 0
        %478 = vperm.xlu0 %477, %v414
        %v479 = vpop.permute.xlu0 %478
        %482 = vset.pattern.permute.xlu0 0
        %483 = vperm.xlu0 %482, %v415
        %v484 = vpop.permute.xlu0 %483
        %487 = vset.pattern.permute.xlu0 0
        %488 = vperm.xlu0 %487, %v416
        %v489 = vpop.permute.xlu0 %488
        %492 = vset.pattern.permute.xlu0 0
        %493 = vperm.xlu0 %492, %v417
        %v494 = vpop.permute.xlu0 %493
        %497 = vset.pattern.permute.xlu0 0
        %498 = vperm.xlu0 %497, %v418
        %v499 = vpop.permute.xlu0 %498
        %502 = vset.pattern.permute.xlu0 0
        %503 = vperm.xlu0 %502, %v419
        %v504 = vpop.permute.xlu0 %503
        %507 = vset.pattern.permute.xlu0 0
        %508 = vperm.xlu0 %507, %v420
        %v509 = vpop.permute.xlu0 %508
        %512 = vset.pattern.permute.xlu0 0
        %513 = vperm.xlu0 %512, %v421
        %v514 = vpop.permute.xlu0 %513
        %517 = vset.pattern.permute.xlu0 0
        %518 = vperm.xlu0 %517, %v422
        %v519 = vpop.permute.xlu0 %518
        %522 = vset.pattern.permute.xlu0 0
        %523 = vperm.xlu0 %522, %v423
        %v524 = vpop.permute.xlu0 %523
        %527 = vset.pattern.permute.xlu0 0
        %528 = vperm.xlu0 %527, %v424
        %v529 = vpop.permute.xlu0 %528
        %532 = vset.pattern.permute.xlu0 0
        %533 = vperm.xlu0 %532, %v425
        %v534 = vpop.permute.xlu0 %533
        %537 = vset.pattern.permute.xlu0 0
        %538 = vperm.xlu0 %537, %v426
        %v539 = vpop.permute.xlu0 %538
        %542 = vset.pattern.permute.xlu0 0
        %543 = vperm.xlu0 %542, %v427
        %v544 = vpop.permute.xlu0 %543
        %547 = vset.pattern.permute.xlu0 0
        %548 = vperm.xlu0 %547, %v428
        %v549 = vpop.permute.xlu0 %548
        %552 = vset.pattern.permute.xlu0 0
        %553 = vperm.xlu0 %552, %v429
        %v554 = vpop.permute.xlu0 %553
        %557 = vset.pattern.permute.xlu0 0
        %558 = vperm.xlu0 %557, %v430
        %v559 = vpop.permute.xlu0 %558
        %562 = vset.pattern.permute.xlu0 0
        %563 = vperm.xlu0 %562, %v431
        %v564 = vpop.permute.xlu0 %563
        %567 = vset.pattern.permute.xlu0 0
        %568 = vperm.xlu0 %567, %v432
        %v569 = vpop.permute.xlu0 %568
        %572 = vset.pattern.permute.xlu0 0
        %573 = vperm.xlu0 %572, %v433
        %v574 = vpop.permute.xlu0 %573
        %577 = vset.pattern.permute.xlu0 0
        %578 = vperm.xlu0 %577, %v434
        %v579 = vpop.permute.xlu0 %578
        %582 = vset.pattern.permute.xlu0 0
        %583 = vperm.xlu0 %582, %v435
        %v584 = vpop.permute.xlu0 %583
        %587 = vset.pattern.permute.xlu0 0
        %588 = vperm.xlu0 %587, %v436
        %v589 = vpop.permute.xlu0 %588
        %592 = vset.pattern.permute.xlu0 0
        %593 = vperm.xlu0 %592, %v437
        %v594 = vpop.permute.xlu0 %593
        %597 = vset.pattern.permute.xlu0 0
        %598 = vperm.xlu0 %597, %v438
        %v599 = vpop.permute.xlu0 %598
        %v603 = vunpack.c.l.b16 %v403
        %v604 = vunpack.c.h.b16 %v403
        %v605 = vunpack.c.l.b16 %v404
        %v606 = vunpack.c.h.b16 %v404
        %v607 = vpack.c.b16 %v605, %v603
        %v608 = vpack.c.b16 %v606, %v604
        %611 = vxpose.xlu0.c.b16.start [1/8] %v607, 128
        %612 = vxpose.xlu0.c.b16.cont [2/8] 0, 128
        %613 = vxpose.xlu0.c.b16.cont [3/8] 0, 128
        %614 = vxpose.xlu0.c.b16.cont [4/8] 0, 128
        %615 = vxpose.xlu0.c.b16.cont [5/8] 0, 128
        %616 = vxpose.xlu0.c.b16.cont [6/8] 0, 128
        %617 = vxpose.xlu0.c.b16.cont [7/8] 0, 128
        %618 = vxpose.xlu0.c.b16.end [8/8] 0, 128
        %v619 = vpop.trf.xlu0
        %v620 = vpop.trf.xlu0
        %v621 = vpop.trf.xlu0
        %v622 = vpop.trf.xlu0
        %v623 = vpop.trf.xlu0
        %v624 = vpop.trf.xlu0
        %v625 = vpop.trf.xlu0
        %v626 = vpop.trf.xlu0
        %627 = vxpose.xlu0.c.b16.start [1/8] %v608, 128
        %628 = vxpose.xlu0.c.b16.cont [2/8] 0, 128
        %629 = vxpose.xlu0.c.b16.cont [3/8] 0, 128
        %630 = vxpose.xlu0.c.b16.cont [4/8] 0, 128
        %631 = vxpose.xlu0.c.b16.cont [5/8] 0, 128
        %632 = vxpose.xlu0.c.b16.cont [6/8] 0, 128
        %633 = vxpose.xlu0.c.b16.cont [7/8] 0, 128
        %634 = vxpose.xlu0.c.b16.end [8/8] 0, 128
        %v635 = vpop.trf.xlu0
        %v636 = vpop.trf.xlu0
        %v637 = vpop.trf.xlu0
        %v638 = vpop.trf.xlu0
        %v639 = vpop.trf.xlu0
        %v640 = vpop.trf.xlu0
        %v641 = vpop.trf.xlu0
        %v642 = vpop.trf.xlu0
        %v645 = vunpack.c.l.b16 %v439
        %v646 = vunpack.c.h.b16 %v439
        %v647 = vunpack.c.l.b16 %v440
        %v648 = vunpack.c.h.b16 %v440
        %v649 = vpack.c.b16 %v647, %v645
        %v650 = vpack.c.b16 %v648, %v646
        %vm653 = vcmask 130048
        %v655 = vsel %vm653, %v619, 0
        %v658 = vsel %vm653, %v620, 0
        %v661 = vsel %vm653, %v621, 0
        %v664 = vsel %vm653, %v622, 0
        %v667 = vsel %vm653, %v623, 0
        %v670 = vsel %vm653, %v624, 0
        %v673 = vsel %vm653, %v625, 0
        %v676 = vsel %vm653, %v626, 0
        %v679 = vsel %vm653, %v635, 0
        %v682 = vsel %vm653, %v636, 0
        %v685 = vsel %vm653, %v637, 0
        %v688 = vsel %vm653, %v638, 0
        %v691 = vsel %vm653, %v639, 0
        %v694 = vsel %vm653, %v640, 0
        %v697 = vsel %vm653, %v641, 0
        %v700 = vsel %vm653, %v642, 0
        %702 = vmatprep.subr.bf16.mxu0 0
        %703 = vmatpush1.bf16.msra.mxu0 0
        %704 = vmatprep.subr.bf16.mxu0 0
        %705 = vmatpush1.bf16.msra.mxu0 0
        %706 = vmatprep.subr.bf16.mxu0 0
        %707 = vmatpush1.bf16.msra.mxu0 0
        %708 = vmatprep.subr.bf16.mxu0 0
        %709 = vmatpush1.bf16.msra.mxu0 0
        %710 = vmatprep.subr.bf16.mxu0 0
        %711 = vmatpush1.bf16.msra.mxu0 0
        %712 = vmatprep.subr.bf16.mxu0 0
        %713 = vmatpush1.bf16.msra.mxu0 0
        %714 = vmatprep.subr.bf16.mxu0 0
        %715 = vmatpush1.bf16.msra.mxu0 0
        %716 = vmatprep.subr.bf16.mxu0 %v650
        %717 = vmatpush1.bf16.msra.mxu0 %v649
        %718 = vmatprep.subr.bf16.mxu0 0
        %719 = vmatpush2.bf16.msra.mxu0 0
        %720 = vmatprep.subr.bf16.mxu0 0
        %721 = vmatpush2.bf16.msra.mxu0 0
        %722 = vmatprep.subr.bf16.mxu0 0
        %723 = vmatpush2.bf16.msra.mxu0 0
        %724 = vmatprep.subr.bf16.mxu0 0
        %725 = vmatpush2.bf16.msra.mxu0 0
        %726 = vmatprep.subr.bf16.mxu0 0
        %727 = vmatpush2.bf16.msra.mxu0 0
        %728 = vmatprep.subr.bf16.mxu0 0
        %729 = vmatpush2.bf16.msra.mxu0 0
        %730 = vmatprep.subr.bf16.mxu0 0
        %731 = vmatpush2.bf16.msra.mxu0 0
        %732 = vmatprep.subr.bf16.mxu0 0
        %733 = vmatpush2.bf16.msra.mxu0 0
        %734 = vmatprep.mubr.bf16.mxu0 0
        %735 = vmatmul.mubr.bf16.gmra.mxu0 %v655
        %v736 = vpop.f32.mrf.mxu0
        %v737 = vadd.f32 %v444, %v736
        %v738 = vpop.f32.mrf.mxu0
        %v739 = vadd.f32 %v444, %v738
        %v740 = vpop.f32.mrf.mxu0
        %v741 = vadd.f32 %v449, %v740
        %v742 = vpop.f32.mrf.mxu0
        %v743 = vadd.f32 %v449, %v742
        %744 = vmatprep.mubr.bf16.mxu0 0
        %745 = vmatmul.mubr.bf16.gmra.mxu0 %v658
        %v746 = vpop.f32.mrf.mxu0
        %v747 = vadd.f32 %v454, %v746
        %v748 = vpop.f32.mrf.mxu0
        %v749 = vadd.f32 %v454, %v748
        %v750 = vpop.f32.mrf.mxu0
        %v751 = vadd.f32 %v459, %v750
        %v752 = vpop.f32.mrf.mxu0
        %v753 = vadd.f32 %v459, %v752
        %754 = vmatprep.mubr.bf16.mxu0 0
        %755 = vmatmul.mubr.bf16.gmra.mxu0 %v661
        %v756 = vpop.f32.mrf.mxu0
        %v757 = vadd.f32 %v464, %v756
        %v758 = vpop.f32.mrf.mxu0
        %v759 = vadd.f32 %v464, %v758
        %v760 = vpop.f32.mrf.mxu0
        %v761 = vadd.f32 %v469, %v760
        %v762 = vpop.f32.mrf.mxu0
        %v763 = vadd.f32 %v469, %v762
        %764 = vmatprep.mubr.bf16.mxu0 0
        %765 = vmatmul.mubr.bf16.gmra.mxu0 %v664
        %v766 = vpop.f32.mrf.mxu0
        %v767 = vadd.f32 %v474, %v766
        %v768 = vpop.f32.mrf.mxu0
        %v769 = vadd.f32 %v474, %v768
        %v770 = vpop.f32.mrf.mxu0
        %v771 = vadd.f32 %v479, %v770
        %v772 = vpop.f32.mrf.mxu0
        %v773 = vadd.f32 %v479, %v772
        %774 = vmatprep.mubr.bf16.mxu0 0
        %775 = vmatmul.mubr.bf16.gmra.mxu0 %v667
        %v776 = vpop.f32.mrf.mxu0
        %v777 = vadd.f32 %v484, %v776
        %v778 = vpop.f32.mrf.mxu0
        %v779 = vadd.f32 %v484, %v778
        %v780 = vpop.f32.mrf.mxu0
        %v781 = vadd.f32 %v489, %v780
        %v782 = vpop.f32.mrf.mxu0
        %v783 = vadd.f32 %v489, %v782
        %784 = vmatprep.mubr.bf16.mxu0 0
        %785 = vmatmul.mubr.bf16.gmra.mxu0 %v670
        %v786 = vpop.f32.mrf.mxu0
        %v787 = vadd.f32 %v494, %v786
        %v788 = vpop.f32.mrf.mxu0
        %v789 = vadd.f32 %v494, %v788
        %v790 = vpop.f32.mrf.mxu0
        %v791 = vadd.f32 %v499, %v790
        %v792 = vpop.f32.mrf.mxu0
        %v793 = vadd.f32 %v499, %v792
        %794 = vmatprep.mubr.bf16.mxu0 0
        %795 = vmatmul.mubr.bf16.gmra.mxu0 %v673
        %v796 = vpop.f32.mrf.mxu0
        %v797 = vadd.f32 %v504, %v796
        %v798 = vpop.f32.mrf.mxu0
        %v799 = vadd.f32 %v504, %v798
        %v800 = vpop.f32.mrf.mxu0
        %v801 = vadd.f32 %v509, %v800
        %v802 = vpop.f32.mrf.mxu0
        %v803 = vadd.f32 %v509, %v802
        %804 = vmatprep.mubr.bf16.mxu0 0
        %805 = vmatmul.mubr.bf16.gmra.mxu0 %v676
        %v806 = vpop.f32.mrf.mxu0
        %v807 = vadd.f32 %v514, %v806
        %v808 = vpop.f32.mrf.mxu0
        %v809 = vadd.f32 %v514, %v808
        %v810 = vpop.f32.mrf.mxu0
        %v811 = vadd.f32 %v519, %v810
        %v812 = vpop.f32.mrf.mxu0
        %v813 = vadd.f32 %v519, %v812
        %814 = vmatprep.mubr.bf16.mxu0 0
        %815 = vmatmul.mubr.bf16.gmra.mxu0 %v679
        %v816 = vpop.f32.mrf.mxu0
        %v817 = vadd.f32 %v524, %v816
        %v818 = vpop.f32.mrf.mxu0
        %v819 = vadd.f32 %v524, %v818
        %v820 = vpop.f32.mrf.mxu0
        %v821 = vadd.f32 %v529, %v820
        %v822 = vpop.f32.mrf.mxu0
        %v823 = vadd.f32 %v529, %v822
        %824 = vmatprep.mubr.bf16.mxu0 0
        %825 = vmatmul.mubr.bf16.gmra.mxu0 %v682
        %v826 = vpop.f32.mrf.mxu0
        %v827 = vadd.f32 %v534, %v826
        %v828 = vpop.f32.mrf.mxu0
        %v829 = vadd.f32 %v534, %v828
        %v830 = vpop.f32.mrf.mxu0
        %v831 = vadd.f32 %v539, %v830
        %v832 = vpop.f32.mrf.mxu0
        %v833 = vadd.f32 %v539, %v832
        %834 = vmatprep.mubr.bf16.mxu0 0
        %835 = vmatmul.mubr.bf16.gmra.mxu0 %v685
        %v836 = vpop.f32.mrf.mxu0
        %v837 = vadd.f32 %v544, %v836
        %v838 = vpop.f32.mrf.mxu0
        %v839 = vadd.f32 %v544, %v838
        %v840 = vpop.f32.mrf.mxu0
        %v841 = vadd.f32 %v549, %v840
        %v842 = vpop.f32.mrf.mxu0
        %v843 = vadd.f32 %v549, %v842
        %844 = vmatprep.mubr.bf16.mxu0 0
        %845 = vmatmul.mubr.bf16.gmra.mxu0 %v688
        %v846 = vpop.f32.mrf.mxu0
        %v847 = vadd.f32 %v554, %v846
        %v848 = vpop.f32.mrf.mxu0
        %v849 = vadd.f32 %v554, %v848
        %v850 = vpop.f32.mrf.mxu0
        %v851 = vadd.f32 %v559, %v850
        %v852 = vpop.f32.mrf.mxu0
        %v853 = vadd.f32 %v559, %v852
        %854 = vmatprep.mubr.bf16.mxu0 0
        %855 = vmatmul.mubr.bf16.gmra.mxu0 %v691
        %v856 = vpop.f32.mrf.mxu0
        %v857 = vadd.f32 %v564, %v856
        %v858 = vpop.f32.mrf.mxu0
        %v859 = vadd.f32 %v564, %v858
        %v860 = vpop.f32.mrf.mxu0
        %v861 = vadd.f32 %v569, %v860
        %v862 = vpop.f32.mrf.mxu0
        %v863 = vadd.f32 %v569, %v862
        %864 = vmatprep.mubr.bf16.mxu0 0
        %865 = vmatmul.mubr.bf16.gmra.mxu0 %v694
        %v866 = vpop.f32.mrf.mxu0
        %v867 = vadd.f32 %v574, %v866
        %v868 = vpop.f32.mrf.mxu0
        %v869 = vadd.f32 %v574, %v868
        %v870 = vpop.f32.mrf.mxu0
        %v871 = vadd.f32 %v579, %v870
        %v872 = vpop.f32.mrf.mxu0
        %v873 = vadd.f32 %v579, %v872
        %874 = vmatprep.mubr.bf16.mxu0 0
        %875 = vmatmul.mubr.bf16.gmra.mxu0 %v697
        %v876 = vpop.f32.mrf.mxu0
        %v877 = vadd.f32 %v584, %v876
        %v878 = vpop.f32.mrf.mxu0
        %v879 = vadd.f32 %v584, %v878
        %v880 = vpop.f32.mrf.mxu0
        %v881 = vadd.f32 %v589, %v880
        %v882 = vpop.f32.mrf.mxu0
        %v883 = vadd.f32 %v589, %v882
        %884 = vmatprep.mubr.bf16.mxu0 0
        %885 = vmatmul.mubr.bf16.gmra.mxu0 %v700
        %v886 = vpop.f32.mrf.mxu0
        %v887 = vadd.f32 %v594, %v886
        %v888 = vpop.f32.mrf.mxu0
        %v889 = vadd.f32 %v594, %v888
        %v890 = vpop.f32.mrf.mxu0
        %v891 = vadd.f32 %v599, %v890
        %v892 = vpop.f32.mrf.mxu0
        %v893 = vadd.f32 %v599, %v892
        %894 = vdwg.mxu0
        %v895 = vld [vmem:[#allocation3] sm:$0x3]
        %v896 = vmax.f32 %v737, %v747
        %v897 = vmax.f32 %v741, %v751
        %v898 = vmax.f32 %v896, %v757
        %v899 = vmax.f32 %v897, %v761
        %v900 = vmax.f32 %v898, %v767
        %v901 = vmax.f32 %v899, %v771
        %v902 = vmax.f32 %v900, %v777
        %v903 = vmax.f32 %v901, %v781
        %v904 = vmax.f32 %v902, %v787
        %v905 = vmax.f32 %v903, %v791
        %v906 = vmax.f32 %v904, %v797
        %v907 = vmax.f32 %v905, %v801
        %v908 = vmax.f32 %v906, %v807
        %v909 = vmax.f32 %v907, %v811
        %v910 = vmax.f32 %v908, %v817
        %v911 = vmax.f32 %v909, %v821
        %v912 = vmax.f32 %v910, %v827
        %v913 = vmax.f32 %v911, %v831
        %v914 = vmax.f32 %v912, %v837
        %v915 = vmax.f32 %v913, %v841
        %v916 = vmax.f32 %v914, %v847
        %v917 = vmax.f32 %v915, %v851
        %v918 = vmax.f32 %v916, %v857
        %v919 = vmax.f32 %v917, %v861
        %v920 = vmax.f32 %v918, %v867
        %v921 = vmax.f32 %v919, %v871
        %v922 = vmax.f32 %v920, %v877
        %v923 = vmax.f32 %v921, %v881
        %v924 = vmax.f32 %v922, %v887
        %v925 = vmax.f32 %v923, %v891
        %v926 = vmax.f32 %v924, %v925
        %v927 = vrot.slane %v926, 4
        %v928 = vmax.f32 %v926, %v927
        %v929 = vrot.slane %v928, 2
        %v930 = vmax.f32 %v928, %v929
        %v931 = vrot.slane %v930, 1
        %v932 = vmax.f32 %v930, %v931
        %v933 = vmax.f32 %v739, %v749
        %v934 = vmax.f32 %v743, %v753
        %v935 = vmax.f32 %v933, %v759
        %v936 = vmax.f32 %v934, %v763
        %v937 = vmax.f32 %v935, %v769
        %v938 = vmax.f32 %v936, %v773
        %v939 = vmax.f32 %v937, %v779
        %v940 = vmax.f32 %v938, %v783
        %v941 = vmax.f32 %v939, %v789
        %v942 = vmax.f32 %v940, %v793
        %v943 = vmax.f32 %v941, %v799
        %v944 = vmax.f32 %v942, %v803
        %v945 = vmax.f32 %v943, %v809
        %v946 = vmax.f32 %v944, %v813
        %v947 = vmax.f32 %v945, %v819
        %v948 = vmax.f32 %v946, %v823
        %v949 = vmax.f32 %v947, %v829
        %v950 = vmax.f32 %v948, %v833
        %v951 = vmax.f32 %v949, %v839
        %v952 = vmax.f32 %v950, %v843
        %v953 = vmax.f32 %v951, %v849
        %v954 = vmax.f32 %v952, %v853
        %v955 = vmax.f32 %v953, %v859
        %v956 = vmax.f32 %v954, %v863
        %v957 = vmax.f32 %v955, %v869
        %v958 = vmax.f32 %v956, %v873
        %v959 = vmax.f32 %v957, %v879
        %v960 = vmax.f32 %v958, %v883
        %v961 = vmax.f32 %v959, %v889
        %v962 = vmax.f32 %v960, %v893
        %v963 = vmax.f32 %v961, %v962
        %v964 = vrot.slane %v963, 4
        %v965 = vmax.f32 %v963, %v964
        %v966 = vrot.slane %v965, 2
        %v967 = vmax.f32 %v965, %v966
        %v968 = vrot.slane %v967, 1
        %v969 = vmax.f32 %v967, %v968
        %v972 = vcombine.low %v932, %v969
        %v974 = vunpack.c.l.s4 1966171168
        %v975 = vunpack.c.0.s8 %v974
        %v976 = vlaneseq
        %v977 = vshrl.u32 %v976, 7
        %v978 = vsub.s32 %v975, %v977
        %v979 = vrot.slane %v972, %v978
        %v981 = vunpack.c.l.s4 1966171168
        %v982 = vunpack.c.0.s8 %v981
        %v983 = vlaneseq
        %v984 = vshrl.u32 %v983, 7
        %v985 = vsub.s32 %v982, %v984
        %v986 = vrot.slane %v979, %v985
        %v988 = vmax.f32 %v895, %v986
        %v989 = vsub.f32 %v895, %v988
        %v990 = vmul.f32 %v989, 1.442695
        %v991 = vpow.pop %v990
        %v993 = vlaneseq
        %v994 = vshrl.u32 %v993, 7
        %v995 = vsub.s32 0, %v994
        %v996 = vrot.slane %v988, %v995
        %v997 = vlaneseq
        %v998 = vshrl.u32 %v997, 7
        %v999 = vsub.s32 1, %v998
        %v1000 = vrot.slane %v988, %v999
        %v1003 = vsub.f32 %v737, %v996
        %v1004 = vsub.f32 %v739, %v1000
        %v1005 = vsub.f32 %v741, %v996
        %v1006 = vsub.f32 %v743, %v1000
        %v1007 = vsub.f32 %v747, %v996
        %v1008 = vsub.f32 %v749, %v1000
        %v1009 = vsub.f32 %v751, %v996
        %v1010 = vsub.f32 %v753, %v1000
        %v1011 = vsub.f32 %v757, %v996
        %v1012 = vsub.f32 %v759, %v1000
        %v1013 = vsub.f32 %v761, %v996
        %v1014 = vsub.f32 %v763, %v1000
        %v1015 = vsub.f32 %v767, %v996
        %v1016 = vsub.f32 %v769, %v1000
        %v1017 = vsub.f32 %v771, %v996
        %v1018 = vsub.f32 %v773, %v1000
        %v1019 = vsub.f32 %v777, %v996
        %v1020 = vsub.f32 %v779, %v1000
        %v1021 = vsub.f32 %v781, %v996
        %v1022 = vsub.f32 %v783, %v1000
        %v1023 = vsub.f32 %v787, %v996
        %v1024 = vsub.f32 %v789, %v1000
        %v1025 = vsub.f32 %v791, %v996
        %v1026 = vsub.f32 %v793, %v1000
        %v1027 = vsub.f32 %v797, %v996
        %v1028 = vsub.f32 %v799, %v1000
        %v1029 = vsub.f32 %v801, %v996
        %v1030 = vsub.f32 %v803, %v1000
        %v1031 = vsub.f32 %v807, %v996
        %v1032 = vsub.f32 %v809, %v1000
        %v1033 = vsub.f32 %v811, %v996
        %v1034 = vsub.f32 %v813, %v1000
        %v1035 = vsub.f32 %v817, %v996
        %v1036 = vsub.f32 %v819, %v1000
        %v1037 = vsub.f32 %v821, %v996
        %v1038 = vsub.f32 %v823, %v1000
        %v1039 = vsub.f32 %v827, %v996
        %v1040 = vsub.f32 %v829, %v1000
        %v1041 = vsub.f32 %v831, %v996
        %v1042 = vsub.f32 %v833, %v1000
        %v1043 = vsub.f32 %v837, %v996
        %v1044 = vsub.f32 %v839, %v1000
        %v1045 = vsub.f32 %v841, %v996
        %v1046 = vsub.f32 %v843, %v1000
        %v1047 = vsub.f32 %v847, %v996
        %v1048 = vsub.f32 %v849, %v1000
        %v1049 = vsub.f32 %v851, %v996
        %v1050 = vsub.f32 %v853, %v1000
        %v1051 = vsub.f32 %v857, %v996
        %v1052 = vsub.f32 %v859, %v1000
        %v1053 = vsub.f32 %v861, %v996
        %v1054 = vsub.f32 %v863, %v1000
        %v1055 = vsub.f32 %v867, %v996
        %v1056 = vsub.f32 %v869, %v1000
        %v1057 = vsub.f32 %v871, %v996
        %v1058 = vsub.f32 %v873, %v1000
        %v1059 = vsub.f32 %v877, %v996
        %v1060 = vsub.f32 %v879, %v1000
        %v1061 = vsub.f32 %v881, %v996
        %v1062 = vsub.f32 %v883, %v1000
        %v1063 = vsub.f32 %v887, %v996
        %v1064 = vsub.f32 %v889, %v1000
        %v1065 = vsub.f32 %v891, %v996
        %v1066 = vsub.f32 %v893, %v1000
        %v1067 = vmul.f32 %v1003, 1.442695
        %v1068 = vpow.pop %v1067
        %v1069 = vmul.f32 %v1004, 1.442695
        %v1070 = vpow.pop %v1069
        %v1071 = vmul.f32 %v1005, 1.442695
        %v1072 = vpow.pop %v1071
        %v1073 = vmul.f32 %v1006, 1.442695
        %v1074 = vpow.pop %v1073
        %v1075 = vmul.f32 %v1007, 1.442695
        %v1076 = vpow.pop %v1075
        %v1077 = vmul.f32 %v1008, 1.442695
        %v1078 = vpow.pop %v1077
        %v1079 = vmul.f32 %v1009, 1.442695
        %v1080 = vpow.pop %v1079
        %v1081 = vmul.f32 %v1010, 1.442695
        %v1082 = vpow.pop %v1081
        %v1083 = vmul.f32 %v1011, 1.442695
        %v1084 = vpow.pop %v1083
        %v1085 = vmul.f32 %v1012, 1.442695
        %v1086 = vpow.pop %v1085
        %v1087 = vmul.f32 %v1013, 1.442695
        %v1088 = vpow.pop %v1087
        %v1089 = vmul.f32 %v1014, 1.442695
        %v1090 = vpow.pop %v1089
        %v1091 = vmul.f32 %v1015, 1.442695
        %v1092 = vpow.pop %v1091
        %v1093 = vmul.f32 %v1016, 1.442695
        %v1094 = vpow.pop %v1093
        %v1095 = vmul.f32 %v1017, 1.442695
        %v1096 = vpow.pop %v1095
        %v1097 = vmul.f32 %v1018, 1.442695
        %v1098 = vpow.pop %v1097
        %v1099 = vmul.f32 %v1019, 1.442695
        %v1100 = vpow.pop %v1099
        %v1101 = vmul.f32 %v1020, 1.442695
        %v1102 = vpow.pop %v1101
        %v1103 = vmul.f32 %v1021, 1.442695
        %v1104 = vpow.pop %v1103
        %v1105 = vmul.f32 %v1022, 1.442695
        %v1106 = vpow.pop %v1105
        %v1107 = vmul.f32 %v1023, 1.442695
        %v1108 = vpow.pop %v1107
        %v1109 = vmul.f32 %v1024, 1.442695
        %v1110 = vpow.pop %v1109
        %v1111 = vmul.f32 %v1025, 1.442695
        %v1112 = vpow.pop %v1111
        %v1113 = vmul.f32 %v1026, 1.442695
        %v1114 = vpow.pop %v1113
        %v1115 = vmul.f32 %v1027, 1.442695
        %v1116 = vpow.pop %v1115
        %v1117 = vmul.f32 %v1028, 1.442695
        %v1118 = vpow.pop %v1117
        %v1119 = vmul.f32 %v1029, 1.442695
        %v1120 = vpow.pop %v1119
        %v1121 = vmul.f32 %v1030, 1.442695
        %v1122 = vpow.pop %v1121
        %v1123 = vmul.f32 %v1031, 1.442695
        %v1124 = vpow.pop %v1123
        %v1125 = vmul.f32 %v1032, 1.442695
        %v1126 = vpow.pop %v1125
        %v1127 = vmul.f32 %v1033, 1.442695
        %v1128 = vpow.pop %v1127
        %v1129 = vmul.f32 %v1034, 1.442695
        %v1130 = vpow.pop %v1129
        %v1131 = vmul.f32 %v1035, 1.442695
        %v1132 = vpow.pop %v1131
        %v1133 = vmul.f32 %v1036, 1.442695
        %v1134 = vpow.pop %v1133
        %v1135 = vmul.f32 %v1037, 1.442695
        %v1136 = vpow.pop %v1135
        %v1137 = vmul.f32 %v1038, 1.442695
        %v1138 = vpow.pop %v1137
        %v1139 = vmul.f32 %v1039, 1.442695
        %v1140 = vpow.pop %v1139
        %v1141 = vmul.f32 %v1040, 1.442695
        %v1142 = vpow.pop %v1141
        %v1143 = vmul.f32 %v1041, 1.442695
        %v1144 = vpow.pop %v1143
        %v1145 = vmul.f32 %v1042, 1.442695
        %v1146 = vpow.pop %v1145
        %v1147 = vmul.f32 %v1043, 1.442695
        %v1148 = vpow.pop %v1147
        %v1149 = vmul.f32 %v1044, 1.442695
        %v1150 = vpow.pop %v1149
        %v1151 = vmul.f32 %v1045, 1.442695
        %v1152 = vpow.pop %v1151
        %v1153 = vmul.f32 %v1046, 1.442695
        %v1154 = vpow.pop %v1153
        %v1155 = vmul.f32 %v1047, 1.442695
        %v1156 = vpow.pop %v1155
        %v1157 = vmul.f32 %v1048, 1.442695
        %v1158 = vpow.pop %v1157
        %v1159 = vmul.f32 %v1049, 1.442695
        %v1160 = vpow.pop %v1159
        %v1161 = vmul.f32 %v1050, 1.442695
        %v1162 = vpow.pop %v1161
        %v1163 = vmul.f32 %v1051, 1.442695
        %v1164 = vpow.pop %v1163
        %v1165 = vmul.f32 %v1052, 1.442695
        %v1166 = vpow.pop %v1165
        %v1167 = vmul.f32 %v1053, 1.442695
        %v1168 = vpow.pop %v1167
        %v1169 = vmul.f32 %v1054, 1.442695
        %v1170 = vpow.pop %v1169
        %v1171 = vmul.f32 %v1055, 1.442695
        %v1172 = vpow.pop %v1171
        %v1173 = vmul.f32 %v1056, 1.442695
        %v1174 = vpow.pop %v1173
        %v1175 = vmul.f32 %v1057, 1.442695
        %v1176 = vpow.pop %v1175
        %v1177 = vmul.f32 %v1058, 1.442695
        %v1178 = vpow.pop %v1177
        %v1179 = vmul.f32 %v1059, 1.442695
        %v1180 = vpow.pop %v1179
        %v1181 = vmul.f32 %v1060, 1.442695
        %v1182 = vpow.pop %v1181
        %v1183 = vmul.f32 %v1061, 1.442695
        %v1184 = vpow.pop %v1183
        %v1185 = vmul.f32 %v1062, 1.442695
        %v1186 = vpow.pop %v1185
        %v1187 = vmul.f32 %v1063, 1.442695
        %v1188 = vpow.pop %v1187
        %v1189 = vmul.f32 %v1064, 1.442695
        %v1190 = vpow.pop %v1189
        %v1191 = vmul.f32 %v1065, 1.442695
        %v1192 = vpow.pop %v1191
        %v1193 = vmul.f32 %v1066, 1.442695
        %v1194 = vpow.pop %v1193
        %v1195 = vld [vmem:[#allocation4] sm:$0x3]
        %v1196 = vmul.f32 %v991, %v1195
        %v1197 = vadd.f32 %v1068, %v1072
        %v1198 = vadd.f32 %v1197, %v1076
        %v1199 = vadd.f32 %v1198, %v1080
        %v1200 = vadd.f32 %v1199, %v1084
        %v1201 = vadd.f32 %v1200, %v1088
        %v1202 = vadd.f32 %v1201, %v1092
        %v1203 = vadd.f32 %v1202, %v1096
        %v1204 = vadd.f32 %v1203, %v1100
        %v1205 = vadd.f32 %v1204, %v1104
        %v1206 = vadd.f32 %v1205, %v1108
        %v1207 = vadd.f32 %v1206, %v1112
        %v1208 = vadd.f32 %v1207, %v1116
        %v1209 = vadd.f32 %v1208, %v1120
        %v1210 = vadd.f32 %v1209, %v1124
        %v1211 = vadd.f32 %v1210, %v1128
        %v1212 = vadd.f32 %v1211, %v1132
        %v1213 = vadd.f32 %v1212, %v1136
        %v1214 = vadd.f32 %v1213, %v1140
        %v1215 = vadd.f32 %v1214, %v1144
        %v1216 = vadd.f32 %v1215, %v1148
        %v1217 = vadd.f32 %v1216, %v1152
        %v1218 = vadd.f32 %v1217, %v1156
        %v1219 = vadd.f32 %v1218, %v1160
        %v1220 = vadd.f32 %v1219, %v1164
        %v1221 = vadd.f32 %v1220, %v1168
        %v1222 = vadd.f32 %v1221, %v1172
        %v1223 = vadd.f32 %v1222, %v1176
        %v1224 = vadd.f32 %v1223, %v1180
        %v1225 = vadd.f32 %v1224, %v1184
        %v1226 = vadd.f32 %v1225, %v1188
        %v1227 = vadd.f32 %v1226, %v1192
        %v1228 = vrot.slane %v1227, 4
        %v1229 = vadd.f32 %v1227, %v1228
        %v1230 = vrot.slane %v1229, 2
        %v1231 = vadd.f32 %v1229, %v1230
        %v1232 = vrot.slane %v1231, 1
        %v1233 = vadd.f32 %v1231, %v1232
        %v1234 = vadd.f32 %v1070, %v1074
        %v1235 = vadd.f32 %v1234, %v1078
        %v1236 = vadd.f32 %v1235, %v1082
        %v1237 = vadd.f32 %v1236, %v1086
        %v1238 = vadd.f32 %v1237, %v1090
        %v1239 = vadd.f32 %v1238, %v1094
        %v1240 = vadd.f32 %v1239, %v1098
        %v1241 = vadd.f32 %v1240, %v1102
        %v1242 = vadd.f32 %v1241, %v1106
        %v1243 = vadd.f32 %v1242, %v1110
        %v1244 = vadd.f32 %v1243, %v1114
        %v1245 = vadd.f32 %v1244, %v1118
        %v1246 = vadd.f32 %v1245, %v1122
        %v1247 = vadd.f32 %v1246, %v1126
        %v1248 = vadd.f32 %v1247, %v1130
        %v1249 = vadd.f32 %v1248, %v1134
        %v1250 = vadd.f32 %v1249, %v1138
        %v1251 = vadd.f32 %v1250, %v1142
        %v1252 = vadd.f32 %v1251, %v1146
        %v1253 = vadd.f32 %v1252, %v1150
        %v1254 = vadd.f32 %v1253, %v1154
        %v1255 = vadd.f32 %v1254, %v1158
        %v1256 = vadd.f32 %v1255, %v1162
        %v1257 = vadd.f32 %v1256, %v1166
        %v1258 = vadd.f32 %v1257, %v1170
        %v1259 = vadd.f32 %v1258, %v1174
        %v1260 = vadd.f32 %v1259, %v1178
        %v1261 = vadd.f32 %v1260, %v1182
        %v1262 = vadd.f32 %v1261, %v1186
        %v1263 = vadd.f32 %v1262, %v1190
        %v1264 = vadd.f32 %v1263, %v1194
        %v1265 = vrot.slane %v1264, 4
        %v1266 = vadd.f32 %v1264, %v1265
        %v1267 = vrot.slane %v1266, 2
        %v1268 = vadd.f32 %v1266, %v1267
        %v1269 = vrot.slane %v1268, 1
        %v1270 = vadd.f32 %v1268, %v1269
        %v1273 = vcombine.low %v1233, %v1270
        %v1275 = vunpack.c.l.s4 1966171168
        %v1276 = vunpack.c.0.s8 %v1275
        %v1277 = vlaneseq
        %v1278 = vshrl.u32 %v1277, 7
        %v1279 = vsub.s32 %v1276, %v1278
        %v1280 = vrot.slane %v1273, %v1279
        %v1282 = vunpack.c.l.s4 1966171168
        %v1283 = vunpack.c.0.s8 %v1282
        %v1284 = vlaneseq
        %v1285 = vshrl.u32 %v1284, 7
        %v1286 = vsub.s32 %v1283, %v1285
        %v1287 = vrot.slane %v1280, %v1286
        %v1289 = vadd.f32 %v1196, %v1287
        %v1290 = vlaneseq
        %vm1291 = vcmp.ge.s32.totalorder %v1290, 0
        %vm1292 = vcmp.lt.s32.totalorder %v1290, 256
        %vm1293 = vmand %vm1291, %vm1292
        %1294 = vst.msk [vmem:[#allocation4] sm:$0x3] %vm1293, %v1289
        %v1295 = vld [vmem:[#allocation5] sm:$0xff]
        %v1296 = vld [vmem:[#allocation5 + $0x8] sm:$0xff]
        %v1297 = vld [vmem:[#allocation5 + $0x10] sm:$0xff]
        %v1298 = vld [vmem:[#allocation5 + $0x18] sm:$0xff]
        %v1300 = vlaneseq
        %v1301 = vshrl.u32 %v1300, 7
        %v1302 = vsub.s32 0, %v1301
        %v1303 = vrot.slane %v991, %v1302
        %v1304 = vlaneseq
        %v1305 = vshrl.u32 %v1304, 7
        %v1306 = vsub.s32 1, %v1305
        %v1307 = vrot.slane %v991, %v1306
        %v1310 = vmul.f32 %v1303, %v1295
        %v1311 = vmul.f32 %v1307, %v1296
        %v1312 = vmul.f32 %v1303, %v1297
        %v1313 = vmul.f32 %v1307, %v1298
        %v1314 = vpack.c.bf16 %v1072, %v1068
        %v1315 = vpack.c.bf16 %v1074, %v1070
        %v1316 = vpack.c.bf16 %v1080, %v1076
        %v1317 = vpack.c.bf16 %v1082, %v1078
        %v1318 = vpack.c.bf16 %v1088, %v1084
        %v1319 = vpack.c.bf16 %v1090, %v1086
        %v1320 = vpack.c.bf16 %v1096, %v1092
        %v1321 = vpack.c.bf16 %v1098, %v1094
        %v1322 = vpack.c.bf16 %v1104, %v1100
        %v1323 = vpack.c.bf16 %v1106, %v1102
        %v1324 = vpack.c.bf16 %v1112, %v1108
        %v1325 = vpack.c.bf16 %v1114, %v1110
        %v1326 = vpack.c.bf16 %v1120, %v1116
        %v1327 = vpack.c.bf16 %v1122, %v1118
        %v1328 = vpack.c.bf16 %v1128, %v1124
        %v1329 = vpack.c.bf16 %v1130, %v1126
        %v1330 = vpack.c.bf16 %v1136, %v1132
        %v1331 = vpack.c.bf16 %v1138, %v1134
        %v1332 = vpack.c.bf16 %v1144, %v1140
        %v1333 = vpack.c.bf16 %v1146, %v1142
        %v1334 = vpack.c.bf16 %v1152, %v1148
        %v1335 = vpack.c.bf16 %v1154, %v1150
        %v1336 = vpack.c.bf16 %v1160, %v1156
        %v1337 = vpack.c.bf16 %v1162, %v1158
        %v1338 = vpack.c.bf16 %v1168, %v1164
        %v1339 = vpack.c.bf16 %v1170, %v1166
        %v1340 = vpack.c.bf16 %v1176, %v1172
        %v1341 = vpack.c.bf16 %v1178, %v1174
        %v1342 = vpack.c.bf16 %v1184, %v1180
        %v1343 = vpack.c.bf16 %v1186, %v1182
        %v1344 = vpack.c.bf16 %v1192, %v1188
        %v1345 = vpack.c.bf16 %v1194, %v1190
        %v1348 = vunpack.c.l.b16 %v405
        %v1349 = vunpack.c.h.b16 %v405
        %v1350 = vunpack.c.l.b16 %v406
        %v1351 = vunpack.c.h.b16 %v406
        %v1352 = vpack.c.b16 %v1350, %v1348
        %v1353 = vpack.c.b16 %v1351, %v1349
        %1356 = vmatprep.subr.bf16.mxu0 %v1329
        %1357 = vmatpush1.bf16.msra.mxu0 %v1328
        %1358 = vmatprep.subr.bf16.mxu0 %v1327
        %1359 = vmatpush1.bf16.msra.mxu0 %v1326
        %1360 = vmatprep.subr.bf16.mxu0 %v1325
        %1361 = vmatpush1.bf16.msra.mxu0 %v1324
        %1362 = vmatprep.subr.bf16.mxu0 %v1323
        %1363 = vmatpush1.bf16.msra.mxu0 %v1322
        %1364 = vmatprep.subr.bf16.mxu0 %v1321
        %1365 = vmatpush1.bf16.msra.mxu0 %v1320
        %1366 = vmatprep.subr.bf16.mxu0 %v1319
        %1367 = vmatpush1.bf16.msra.mxu0 %v1318
        %1368 = vmatprep.subr.bf16.mxu0 %v1317
        %1369 = vmatpush1.bf16.msra.mxu0 %v1316
        %1370 = vmatprep.subr.bf16.mxu0 %v1315
        %1371 = vmatpush1.bf16.msra.mxu0 %v1314
        %1372 = vmatprep.subr.bf16.mxu0 %v1345
        %1373 = vmatpush2.bf16.msra.mxu0 %v1344
        %1374 = vmatprep.subr.bf16.mxu0 %v1343
        %1375 = vmatpush2.bf16.msra.mxu0 %v1342
        %1376 = vmatprep.subr.bf16.mxu0 %v1341
        %1377 = vmatpush2.bf16.msra.mxu0 %v1340
        %1378 = vmatprep.subr.bf16.mxu0 %v1339
        %1379 = vmatpush2.bf16.msra.mxu0 %v1338
        %1380 = vmatprep.subr.bf16.mxu0 %v1337
        %1381 = vmatpush2.bf16.msra.mxu0 %v1336
        %1382 = vmatprep.subr.bf16.mxu0 %v1335
        %1383 = vmatpush2.bf16.msra.mxu0 %v1334
        %1384 = vmatprep.subr.bf16.mxu0 %v1333
        %1385 = vmatpush2.bf16.msra.mxu0 %v1332
        %1386 = vmatprep.subr.bf16.mxu0 %v1331
        %1387 = vmatpush2.bf16.msra.mxu0 %v1330
        %1388 = vmatprep.mubr.bf16.mxu0 %v1353
        %1389 = vmatmul.mubr.bf16.gmra.mxu0 %v1352
        %v1390 = vpop.f32.mrf.mxu0
        %v1391 = vadd.f32 0.0, %v1390
        %v1392 = vpop.f32.mrf.mxu0
        %v1393 = vadd.f32 0.0, %v1392
        %v1394 = vpop.f32.mrf.mxu0
        %v1395 = vadd.f32 0.0, %v1394
        %v1396 = vpop.f32.mrf.mxu0
        %v1397 = vadd.f32 0.0, %v1396
        %1398 = vdwg.mxu0
        %v1399 = vadd.f32 %v1310, %v1391
        %v1400 = vadd.f32 %v1311, %v1393
        %v1401 = vadd.f32 %v1312, %v1395
        %v1402 = vadd.f32 %v1313, %v1397
        %1403 = vst [vmem:[#allocation5] sm:$0xff] %v1399
        %1404 = vst [vmem:[#allocation5 + $0x8] sm:$0xff] %v1400
        %1405 = vst [vmem:[#allocation5 + $0x10] sm:$0xff] %v1401
        %1406 = vst [vmem:[#allocation5 + $0x18] sm:$0xff] %v1402
        %1407 = vst.msk [vmem:[#allocation3] sm:$0x3] %vm1293, %v988
        // Predicated region
        $region45: #{tpu_custom_call.1} parent=39 // pred_check
          %p1408 = pneg %p371
        $region46: #{tpu_custom_call.1} parent=39 // pred_check_branch
          %1410 = sbr.rel (%p1408) target = $region48
        $region47: #{tpu_custom_call.1} parent=39 // pred_region
          %s1411 = sld [smem:[#allocation6]]
          %v1412 = vld [vmem:[#allocation4] sm:$0x3]
          %v1413 = vrcp.pop %v1412
          %v1414 = vld [vmem:[#allocation5] sm:$0xff]
          %v1415 = vld [vmem:[#allocation5 + $0x8] sm:$0xff]
          %v1416 = vld [vmem:[#allocation5 + $0x10] sm:$0xff]
          %v1417 = vld [vmem:[#allocation5 + $0x18] sm:$0xff]
          %v1419 = vlaneseq
          %v1420 = vshrl.u32 %v1419, 7
          %v1421 = vsub.s32 0, %v1420
          %v1422 = vrot.slane %v1413, %v1421
          %v1423 = vlaneseq
          %v1424 = vshrl.u32 %v1423, 7
          %v1425 = vsub.s32 1, %v1424
          %v1426 = vrot.slane %v1413, %v1425
          %v1429 = vmul.f32 %v1414, %v1422
          %v1430 = vmul.f32 %v1415, %v1426
          %v1431 = vmul.f32 %v1416, %v1422
          %v1432 = vmul.f32 %v1417, %v1426
          %v1433 = vstv %s1411
          %v1434 = vmul.f32 %v1433, %v1429
          %v1435 = vmul.f32 %v1433, %v1430
          %v1436 = vmul.f32 %v1433, %v1431
          %v1437 = vmul.f32 %v1433, %v1432
          %v1438 = vld [vmem:[%s337] sm:$0xff]
          %v1439 = vld [vmem:[%s337 + $0x8] sm:$0xff]
          %v1440 = vld [vmem:[%s337 + $0x10] sm:$0xff]
          %v1441 = vld [vmem:[%s337 + $0x18] sm:$0xff]
          %v1442 = vadd.f32 %v1434, %v1438
          %v1443 = vadd.f32 %v1435, %v1439
          %v1444 = vadd.f32 %v1436, %v1440
          %v1445 = vadd.f32 %v1437, %v1441
          %1446 = vst [vmem:[%s328] sm:$0xff] %v1442
          %1447 = vst [vmem:[%s328 + $0x8] sm:$0xff] %v1443
          %1448 = vst [vmem:[%s328 + $0x10] sm:$0xff] %v1444
          %1449 = vst [vmem:[%s328 + $0x18] sm:$0xff] %v1445
        $region48: #{tpu_custom_call.1} parent=39 // pred_fallthru
          _
        %s1450 = sand.u32 %s182, 1
        %s1451 = scalar_lea.sflag [#allocation8], %s1450
        %s1452 = sand.u32 %s182, 1
        %s1453 = smul.addr %s1452, 32
        %s1454 = scalar_lea.vmem [#allocation7], %s1453
        // Predicated region
        $region49: #{tpu_custom_call.1} parent=39 // pred_check
          %p1455 = pneg %p192
        $region50: #{tpu_custom_call.1} parent=39 // pred_check_branch
          %1457 = sbr.rel (%p1455) target = $region52
        $region51: #{tpu_custom_call.1} parent=39 // pred_region
          %s1458 = smul.u32 2, %s26
          %s1460 = ssub.s32 512, 512
          %1461 = vsyncadd %s1451, %s1460
          %s1462 = smul.addr %s25, 4
          %s1463 = sadd.s32 %s1458, %s1462
          %s1464 = smul.addr %s1463, 128
          %s1465 = scalar_lea.hbm %s5, %s1464
          %s1466 = sshll.u32 %s1454, 4
          %s1467 = int_to_ptr.vmem [resolvable:$true] %s1466
          %1472 = dma.vmem_to_hbm [thread:$0]  %s1467, 512, %s1465, %s1451, 256, 256, 16
        $region52: #{tpu_custom_call.1} parent=39 // pred_fallthru
          _
      $region40: #{tpu_custom_call.1} parent=5 // pred_fallthru
        _
      %p1473 = scmp.le.s32.totalorder 2, %s15
      // Predicated region
      $region53: #{tpu_custom_call.1} parent=5 // pred_check
        %p1474 = pneg %p1473
      $region54: #{tpu_custom_call.1} parent=5 // pred_check_branch
        %1476 = sbr.rel (%p1474) target = $region56
      $region55: #{tpu_custom_call.1} parent=5 // pred_region
        %s1477 = ssub.s32 %s15, 2
        // Predicated region
        $region57: #{tpu_custom_call.1} parent=55 // pred_check
          %p1478 = pneg %p198
        $region58: #{tpu_custom_call.1} parent=55 // pred_check_branch
          %1480 = sbr.rel (%p1478) target = $region60
        $region59: #{tpu_custom_call.1} parent=55 // pred_region
          %s1481 = sand.u32 %s183, 1
          %s1482 = scalar_lea.sflag [#allocation8], %s1481
          %s1483 = sand.u32 %s183, 1
          %s1484 = smul.addr %s1483, 32
          %s1485 = scalar_lea.vmem [#allocation7], %s1484
          %1486 = dma.done %s1482, 512
        $region60: #{tpu_custom_call.1} parent=55 // pred_fallthru
          _
      $region56: #{tpu_custom_call.1} parent=5 // pred_fallthru
        _
    $region6: #{tpu_custom_call.1} parent=1 // loop_footer
      %s19 = sadd.s32 1, %s15
    $region7: #{tpu_custom_call.1} parent=1 // loop_footer_branch
      %14 = sbr.rel target = $region3
    $region8: #{tpu_custom_call.1} parent=1 // loop_exit
      _
    %1487 = vsyncpa [#allocation8], 1
    %s1488 = scalar_lea.sflag [#allocation8], 1
    %1489 = vsyncpa %s1488, 1

</llo_original>
